<compile_context>
chip_gen: v7x
topology: tpu7x:2x2x1
jax: 0.10.0
libtpu: 0.0.40
codegen_flags: <defaults>
</compile_context>

<pallas_src>
import numpy as np
import jax
import jax.numpy as jnp
from jax.experimental import pallas as pl
from jax.experimental.pallas import tpu as pltpu


# --------------------------------------------------------------------------
# Fused block kernel: SE (CPSPPSELayer) + pre-act bottleneck, one image per
# grid step, everything in (C, H*W) channel-major / lane-dense layout.
# --------------------------------------------------------------------------
def _make_block_kernel(H, W, stride, has_shortcut):
    HW = H * W

    def kernel(x_ref, wse_ref, sesc_ref, sesh_ref, pmatT_ref, w1fc_ref,
               w2fc_ref, cmask_ref, bn1s_ref, bn1h_ref, w1_ref,
               bn2s_ref, bn2h_ref, w2_ref, bn3s_ref, bn3h_ref, w3_ref,
               wsc_ref, *rest):
        if stride != 1:
            dmat_ref, out_ref = rest
        else:
            (out_ref,) = rest

        x = x_ref[0]                                             # (Cin, HW)

        # ---------------- SE branch (CPSPPSELayer) ----------------
        # 1x1 conv + folded BN + ReLU (lane-dense over HW).
        y = jnp.dot(wse_ref[...], x, preferred_element_type=jnp.float32)
        y = jnp.maximum(y * sesc_ref[...] + sesh_ref[...], 0.0)  # (Cexp, HW)
        # Spatial pyramid pooling (1x1 + 2x2 + 4x4) as one matmul.
        pooled = jnp.dot(y, pmatT_ref[...],
                         preferred_element_type=jnp.float32)     # (Cexp, 21)
        # Flatten to a (21*Cexp, 1) column (p-major) so fc1 is ONE matmul
        # with K = 21*Cexp instead of 21 tiny K=Cexp matmuls.
        flat = jnp.concatenate([pooled[:, p:p + 1] for p in range(21)],
                               axis=0)                            # (21*Cexp, 1)
        h = jnp.maximum(
            jnp.dot(w1fc_ref[...], flat,
                    preferred_element_type=jnp.float32), 0.0)    # (hid, 1)
        pse = jax.nn.sigmoid(
            jnp.dot(w2fc_ref[...], h,
                    preferred_element_type=jnp.float32))          # (Cexp, 1)

        # ---------------- main pre-activation path ----------------
        pre = jnp.maximum(x * bn1s_ref[...] + bn1h_ref[...], 0.0)  # relu(bn1)

        if has_shortcut:
            sc = jnp.dot(wsc_ref[...], pre,
                         preferred_element_type=jnp.float32)       # (Cexp, HW)
            if stride != 1:
                sc = jnp.dot(sc, dmat_ref[...],
                             preferred_element_type=jnp.float32)   # (Cexp, HoWo)
        else:
            # identity shortcut (pre-act ResNet adds raw x); only valid when
            # stride == 1 and Cin == Cexp.
            sc = x

        # conv1 (1x1) + bn2 + relu
        t = jnp.dot(w1_ref[...], pre, preferred_element_type=jnp.float32)
        t = jnp.maximum(t * bn2s_ref[...] + bn2h_ref[...], 0.0)    # (P, HW)

        # conv2 (3x3, pad 1) at full resolution as ONE matmul with K = 9*P.
        # im2col rows come from lane-rolls of the flat (P, HW) map, with
        # precomputed per-tap border masks providing the zero padding.
        cols = []
        k = 0
        for dy in (-1, 0, 1):
            for dx in (-1, 0, 1):
                off = dy * W + dx
                shifted = t if off == 0 else pltpu.roll(
                    t, shift=(-off) % HW, axis=1)
                cols.append(shifted * cmask_ref[k:k + 1, :])
                k += 1
        col = jnp.concatenate(cols, axis=0)                        # (9P, HW)
        u = jnp.dot(w2_ref[...], col,
                    preferred_element_type=jnp.float32)            # (P, HW)
        if stride != 1:
            # stride-s conv == full-res conv followed by spatial subsampling;
            # the subsampling is a matmul with a 0/1 selection matrix so no
            # sublane-strided gathers are needed.
            # TODO(synk): at production sizes replace full-res compute with
            # row-block tiling + strided BlockSpec reads.
            u = jnp.dot(u, dmat_ref[...],
                        preferred_element_type=jnp.float32)        # (P, HoWo)

        # bn3 + relu + conv3 (1x1)
        z = jnp.maximum(u * bn3s_ref[...] + bn3h_ref[...], 0.0)
        o = jnp.dot(w3_ref[...], z, preferred_element_type=jnp.float32)

        # SE channel scaling + residual add
        out_ref[0] = o * pse + sc

    return kernel


def block_forward(x_nchw, kp, stride):
    B, Cin, H, W = x_nchw.shape
    HW = H * W
    Cexp = kp['w3'].shape[0]
    Hout = (H - 1) // stride + 1
    Wout = (W - 1) // stride + 1
    HoWo = Hout * Wout
    has_shortcut = (stride != 1) or (Cin != Cexp)

    x_flat = x_nchw.reshape(B, Cin, HW)   # NCHW is already channel-major

    def full_spec(arr):
        n = arr.ndim
        return pl.BlockSpec(arr.shape, lambda b, n=n: (0,) * n)

    weights = [kp['wse'], kp['se_scale'], kp['se_shift'], kp['pmatT'],
               kp['w1fc'], kp['w2fc'], kp['cmask'],
               kp['bn1s'], kp['bn1h'], kp['w1'],
               kp['bn2s'], kp['bn2h'], kp['w2'],
               kp['bn3s'], kp['bn3h'], kp['w3'], kp['wsc']]
    if stride != 1:
        weights.append(kp['dmat'])

    # TODO(synk): at production sizes add pipeline_mode=pl.Buffered(1) on these
    # grid-invariant weight specs and set vmem_limit_bytes explicitly.
    in_specs = [pl.BlockSpec((1, Cin, HW), lambda b: (b, 0, 0))] + \
               [full_spec(w) for w in weights]

    kernel = _make_block_kernel(H, W, stride, has_shortcut)

    return pl.pallas_call(
        kernel,
        out_shape=jax.ShapeDtypeStruct((B, Cexp, HoWo), jnp.float32),
        grid_spec=pltpu.PrefetchScalarGridSpec(
            num_scalar_prefetch=0,
            grid=(B,),
            in_specs=in_specs,
            out_specs=pl.BlockSpec((1, Cexp, HoWo), lambda b: (b, 0, 0)),
        ),
        compiler_params=pltpu.CompilerParams(
            dimension_semantics=("parallel",)),   # v7x: split batch over 2 TCs
    )(x_flat, *weights)


# --------------------------------------------------------------------------
# Parameter construction (deterministic, in-script) + layout conversion glue
# --------------------------------------------------------------------------
def init_torch_params(key, in_planes, planes, reduction=16):
    expansion = 4
    Cexp = expansion * planes
    hidden = max(Cexp // reduction, 1)
    keys = jax.random.split(key, 32)
    it = iter(keys)

    def nrm(shape, scale=0.1):
        return scale * jax.random.normal(next(it), shape, dtype=jnp.float32)

    def bn(C):
        g = 1.0 + 0.1 * jax.random.normal(next(it), (C,), jnp.float32)
        b = 0.1 * jax.random.normal(next(it), (C,), jnp.float32)
        m = 0.1 * jax.random.normal(next(it), (C,), jnp.float32)
        v = 0.5 + jax.random.uniform(next(it), (C,), jnp.float32)
        return (g, b, m, v)

    p = {}
    p['se_conv_w'] = nrm((Cexp, in_planes, 1, 1))
    p['se_bn'] = bn(Cexp)
    p['fc1_w'] = nrm((hidden, 21 * Cexp))
    p['fc2_w'] = nrm((Cexp, hidden))
    p['bn1'] = bn(in_planes)
    p['conv1_w'] = nrm((planes, in_planes, 1, 1))
    p['bn2'] = bn(planes)
    p['conv2_w'] = nrm((planes, planes, 3, 3))
    p['bn3'] = bn(planes)
    p['conv3_w'] = nrm((Cexp, planes, 1, 1))
    p['sc_w'] = nrm((Cexp, in_planes, 1, 1))
    return p


def build_pool_matrix(H, W):
    # SPP average-pool operator (assumes H, W divisible by 4, like the test).
    def pool_rows(k):
        rows = np.zeros((k * k, H * W), np.float32)
        hs, ws = H // k, W // k
        for i in range(k):
            for j in range(k):
                for hh in range(i * hs, (i + 1) * hs):
                    for ww in range(j * ws, (j + 1) * ws):
                        rows[i * k + j, hh * W + ww] = 1.0 / (hs * ws)
        return rows
    return np.concatenate([pool_rows(1), pool_rows(2), pool_rows(4)], axis=0)


def build_conv_mask(H, W):
    # Per-tap validity mask for the 3x3 conv (1 where the shifted source pixel
    # is inside the image, 0 where zero-padding applies).
    m = np.zeros((9, H * W), np.float32)
    k = 0
    for dy in (-1, 0, 1):
        for dx in (-1, 0, 1):
            for y in range(H):
                for x in range(W):
                    yi, xi = y + dy, x + dx
                    if 0 <= yi < H and 0 <= xi < W:
                        m[k, y * W + x] = 1.0
            k += 1
    return m


def build_downsample_matrix(H, W, stride):
    Hout = (H - 1) // stride + 1
    Wout = (W - 1) // stride + 1
    d = np.zeros((H * W, Hout * Wout), np.float32)
    for yo in range(Hout):
        for xo in range(Wout):
            d[(yo * stride) * W + xo * stride, yo * Wout + xo] = 1.0
    return d


def make_kernel_params(tp, H, W, stride):
    eps = 1e-5

    def bn_col(bn):
        g, b, m, v = bn
        scale = g / jnp.sqrt(v + eps)
        shift = b - m * scale
        return scale[:, None], shift[:, None]            # (C, 1) columns

    Cexp = tp['se_conv_w'].shape[0]
    P = tp['conv1_w'].shape[0]

    kp = {}
    # --- SE branch ---
    kp['wse'] = tp['se_conv_w'][:, :, 0, 0]                       # (Cexp, Cin)
    kp['se_scale'], kp['se_shift'] = bn_col(tp['se_bn'])
    kp['pmatT'] = jnp.asarray(build_pool_matrix(H, W).T)          # (HW, 21)
    # fc1 columns permuted from torch order [c | (c,i2,j2) | (c,i4,j4)] to the
    # kernel's p-major flattening index p*Cexp + c.
    perm = np.zeros(21 * Cexp, np.int32)
    for c in range(Cexp):
        perm[c] = c
        for t in range(4):
            perm[(1 + t) * Cexp + c] = Cexp + c * 4 + t
        for t in range(16):
            perm[(5 + t) * Cexp + c] = 5 * Cexp + c * 16 + t
    kp['w1fc'] = tp['fc1_w'][:, perm]                             # (hid, 21*Cexp)
    kp['w2fc'] = tp['fc2_w']                                      # (Cexp, hid)
    # --- main path ---
    kp['bn1s'], kp['bn1h'] = bn_col(tp['bn1'])
    kp['w1'] = tp['conv1_w'][:, :, 0, 0]                          # (P, Cin)
    kp['bn2s'], kp['bn2h'] = bn_col(tp['bn2'])
    kp['w2'] = jnp.transpose(tp['conv2_w'], (0, 2, 3, 1)).reshape(P, 9 * P)
    kp['bn3s'], kp['bn3h'] = bn_col(tp['bn3'])
    kp['w3'] = tp['conv3_w'][:, :, 0, 0]                          # (Cexp, P)
    kp['wsc'] = tp['sc_w'][:, :, 0, 0]                            # (Cexp, Cin)
    kp['cmask'] = jnp.asarray(build_conv_mask(H, W))              # (9, HW)
    if stride != 1:
        kp['dmat'] = jnp.asarray(build_downsample_matrix(H, W, stride))
    return kp


# --------------------------------------------------------------------------
# Pure-JAX NCHW reference mirroring the PyTorch block forward (for validation)
# --------------------------------------------------------------------------
def reference_forward(x, tp, stride):
    eps = 1e-5
    hi = jax.lax.Precision.HIGHEST
    relu = jax.nn.relu

    def bn(t, params):
        g, b, m, v = params
        return (t - m[None, :, None, None]) / jnp.sqrt(
            v[None, :, None, None] + eps) * g[None, :, None, None] + \
            b[None, :, None, None]

    def conv(t, w, s=1, p=0):
        return jax.lax.conv_general_dilated(
            t, w, (s, s), [(p, p), (p, p)],
            dimension_numbers=('NCHW', 'OIHW', 'NCHW'), precision=hi)

    # SE branch
    y = relu(bn(conv(x, tp['se_conv_w']), tp['se_bn']))
    B, C = y.shape[0], y.shape[1]

    def apool(t, k):
        _, _, Hh, Ww = t.shape
        return t.reshape(B, C, k, Hh // k, k, Ww // k).mean(axis=(3, 5))

    y1 = apool(y, 1).reshape(B, C)
    y2 = apool(y, 2).reshape(B, 4 * C)
    y3 = apool(y, 4).reshape(B, 16 * C)
    ycat = jnp.concatenate([y1, y2, y3], axis=1)
    h = relu(jnp.dot(ycat, tp['fc1_w'].T, precision=hi))
    pse = jax.nn.sigmoid(jnp.dot(h, tp['fc2_w'].T, precision=hi))[:, :, None, None]
    # main path
    out = relu(bn(x, tp['bn1']))
    shortcut = conv(out, tp['sc_w'], stride, 0)
    out = conv(out, tp['conv1_w'], 1, 0)
    out = conv(relu(bn(out, tp['bn2'])), tp['conv2_w'], stride, 1)
    out = conv(relu(bn(out, tp['bn3'])), tp['conv3_w'], 1, 0)
    return out * pse + shortcut


# --------------------------------------------------------------------------
if __name__ == "__main__":
    # small config: in_planes=4, planes=4 -> expansion*planes=16 out channels
    B, in_planes, planes, H, W = 2, 4, 4, 16, 16
    stride, reduction = 1, 16
    # TODO(synk): identity-SE path (in_planes == 4*planes, SE conv absent) and
    # the identity-shortcut path are not exercised here; only the
    # conv-shortcut / conv-SE configuration is validated.

    key = jax.random.PRNGKey(0)
    kx, kp_key = jax.random.split(key)
    x_nchw = jax.random.normal(kx, (B, in_planes, H, W), jnp.float32)

    tp = init_torch_params(kp_key, in_planes, planes, reduction)
    kp = make_kernel_params(tp, H, W, stride)

    out_flat = block_forward(x_nchw, kp, stride)        # (B, Cexp, Hout*Wout)
    out_flat = jax.block_until_ready(out_flat)

    Cexp = out_flat.shape[1]
    Hout = (H - 1) // stride + 1
    Wout = (W - 1) // stride + 1
    out_nchw = out_flat.reshape(B, Cexp, Hout, Wout)

    ref = reference_forward(x_nchw, tp, stride)
    np.testing.assert_allclose(np.asarray(out_nchw), np.asarray(ref),
                               atol=5e-3, rtol=5e-2)
    print("KERNEL_OK")
</pallas_src>

<mosaic_0001>
module attributes {stable_mosaic.version = 11 : i64} {
  func.func @kernel(%arg0: i32, %arg1: memref<1x4x256xf32, #tpu.memory_space<vmem>>, %arg2: memref<16x4xf32, #tpu.memory_space<vmem>>, %arg3: memref<16x1xf32, #tpu.memory_space<vmem>>, %arg4: memref<16x1xf32, #tpu.memory_space<vmem>>, %arg5: memref<256x21xf32, #tpu.memory_space<vmem>>, %arg6: memref<1x336xf32, #tpu.memory_space<vmem>>, %arg7: memref<16x1xf32, #tpu.memory_space<vmem>>, %arg8: memref<9x256xf32, #tpu.memory_space<vmem>>, %arg9: memref<4x1xf32, #tpu.memory_space<vmem>>, %arg10: memref<4x1xf32, #tpu.memory_space<vmem>>, %arg11: memref<4x4xf32, #tpu.memory_space<vmem>>, %arg12: memref<4x1xf32, #tpu.memory_space<vmem>>, %arg13: memref<4x1xf32, #tpu.memory_space<vmem>>, %arg14: memref<4x36xf32, #tpu.memory_space<vmem>>, %arg15: memref<4x1xf32, #tpu.memory_space<vmem>>, %arg16: memref<4x1xf32, #tpu.memory_space<vmem>>, %arg17: memref<16x4xf32, #tpu.memory_space<vmem>>, %arg18: memref<16x4xf32, #tpu.memory_space<vmem>>, %arg19: memref<1x16x256xf32, #tpu.memory_space<vmem>>) attributes {dimension_semantics = [#tpu.dimension_semantics<parallel>], iteration_bounds = array<i64: 2>, scalar_prefetch = 0 : i64, scratch_operands = 0 : i64, tpu.core_type = #tpu.core_type<tc>, window_params = [{transform_indices = @transform_0, window_bounds = array<i64: 1, 4, 256>}, {pipeline_mode = #tpu.pipeline_mode<synchronous>, transform_indices = @transform_1, window_bounds = array<i64: 16, 4>}, {pipeline_mode = #tpu.pipeline_mode<synchronous>, transform_indices = @transform_2, window_bounds = array<i64: 16, 1>}, {pipeline_mode = #tpu.pipeline_mode<synchronous>, transform_indices = @transform_3, window_bounds = array<i64: 16, 1>}, {pipeline_mode = #tpu.pipeline_mode<synchronous>, transform_indices = @transform_4, window_bounds = array<i64: 256, 21>}, {pipeline_mode = #tpu.pipeline_mode<synchronous>, transform_indices = @transform_5, window_bounds = array<i64: 1, 336>}, {pipeline_mode = #tpu.pipeline_mode<synchronous>, transform_indices = @transform_6, window_bounds = array<i64: 16, 1>}, {pipeline_mode = #tpu.pipeline_mode<synchronous>, transform_indices = @transform_7, window_bounds = array<i64: 9, 256>}, {pipeline_mode = #tpu.pipeline_mode<synchronous>, transform_indices = @transform_8, window_bounds = array<i64: 4, 1>}, {pipeline_mode = #tpu.pipeline_mode<synchronous>, transform_indices = @transform_9, window_bounds = array<i64: 4, 1>}, {pipeline_mode = #tpu.pipeline_mode<synchronous>, transform_indices = @transform_10, window_bounds = array<i64: 4, 4>}, {pipeline_mode = #tpu.pipeline_mode<synchronous>, transform_indices = @transform_11, window_bounds = array<i64: 4, 1>}, {pipeline_mode = #tpu.pipeline_mode<synchronous>, transform_indices = @transform_12, window_bounds = array<i64: 4, 1>}, {pipeline_mode = #tpu.pipeline_mode<synchronous>, transform_indices = @transform_13, window_bounds = array<i64: 4, 36>}, {pipeline_mode = #tpu.pipeline_mode<synchronous>, transform_indices = @transform_14, window_bounds = array<i64: 4, 1>}, {pipeline_mode = #tpu.pipeline_mode<synchronous>, transform_indices = @transform_15, window_bounds = array<i64: 4, 1>}, {pipeline_mode = #tpu.pipeline_mode<synchronous>, transform_indices = @transform_16, window_bounds = array<i64: 16, 4>}, {pipeline_mode = #tpu.pipeline_mode<synchronous>, transform_indices = @transform_17, window_bounds = array<i64: 16, 4>}, {transform_indices = @transform_18, window_bounds = array<i64: 1, 16, 256>}]} {
    %c0 = arith.constant 0 : index
    %c0_0 = arith.constant 0 : index
    %c0_1 = arith.constant 0 : index
    %0 = vector.load %arg1[%c0, %c0_0, %c0_1] : memref<1x4x256xf32, #tpu.memory_space<vmem>>, vector<1x4x256xf32>
    %1 = vector.shape_cast %0 : vector<1x4x256xf32> to vector<4x256xf32>
    %c0_2 = arith.constant 0 : index
    %c0_3 = arith.constant 0 : index
    %2 = vector.load %arg2[%c0_2, %c0_3] : memref<16x4xf32, #tpu.memory_space<vmem>>, vector<16x4xf32>
    %cst = arith.constant dense<0.000000e+00> : vector<16x256xf32>
    %3 = tpu.matmul %2, %1, %cst {dimension_numbers = #tpu.dot_dimension_numbers<[1], [0], [0], [1], [0, 0, 1, 1], [], []>} : vector<16x4xf32>, vector<4x256xf32>, vector<16x256xf32> -> vector<16x256xf32>
    %c0_4 = arith.constant 0 : index
    %c0_5 = arith.constant 0 : index
    %4 = vector.load %arg3[%c0_4, %c0_5] : memref<16x1xf32, #tpu.memory_space<vmem>>, vector<16x1xf32>
    %5 = vector.broadcast %4 : vector<16x1xf32> to vector<16x256xf32>
    %6 = arith.mulf %3, %5 : vector<16x256xf32>
    %c0_6 = arith.constant 0 : index
    %c0_7 = arith.constant 0 : index
    %7 = vector.load %arg4[%c0_6, %c0_7] : memref<16x1xf32, #tpu.memory_space<vmem>>, vector<16x1xf32>
    %8 = vector.broadcast %7 : vector<16x1xf32> to vector<16x256xf32>
    %9 = arith.addf %6, %8 : vector<16x256xf32>
    %cst_8 = arith.constant 0.000000e+00 : f32
    %10 = vector.broadcast %cst_8 : f32 to vector<16x256xf32>
    %11 = arith.maximumf %9, %10 : vector<16x256xf32>
    %c0_9 = arith.constant 0 : index
    %c0_10 = arith.constant 0 : index
    %12 = vector.load %arg5[%c0_9, %c0_10] : memref<256x21xf32, #tpu.memory_space<vmem>>, vector<256x21xf32>
    %cst_11 = arith.constant dense<0.000000e+00> : vector<16x21xf32>
    %13 = tpu.matmul %11, %12, %cst_11 {dimension_numbers = #tpu.dot_dimension_numbers<[1], [0], [0], [1], [0, 0, 1, 1], [], []>} : vector<16x256xf32>, vector<256x21xf32>, vector<16x21xf32> -> vector<16x21xf32>
    %14 = vector.extract_strided_slice %13 {offsets = [0, 0], sizes = [16, 1], strides = [1, 1]} : vector<16x21xf32> to vector<16x1xf32>
    %15 = vector.extract_strided_slice %13 {offsets = [0, 1], sizes = [16, 1], strides = [1, 1]} : vector<16x21xf32> to vector<16x1xf32>
    %16 = vector.extract_strided_slice %13 {offsets = [0, 2], sizes = [16, 1], strides = [1, 1]} : vector<16x21xf32> to vector<16x1xf32>
    %17 = vector.extract_strided_slice %13 {offsets = [0, 3], sizes = [16, 1], strides = [1, 1]} : vector<16x21xf32> to vector<16x1xf32>
    %18 = vector.extract_strided_slice %13 {offsets = [0, 4], sizes = [16, 1], strides = [1, 1]} : vector<16x21xf32> to vector<16x1xf32>
    %19 = vector.extract_strided_slice %13 {offsets = [0, 5], sizes = [16, 1], strides = [1, 1]} : vector<16x21xf32> to vector<16x1xf32>
    %20 = vector.extract_strided_slice %13 {offsets = [0, 6], sizes = [16, 1], strides = [1, 1]} : vector<16x21xf32> to vector<16x1xf32>
    %21 = vector.extract_strided_slice %13 {offsets = [0, 7], sizes = [16, 1], strides = [1, 1]} : vector<16x21xf32> to vector<16x1xf32>
    %22 = vector.extract_strided_slice %13 {offsets = [0, 8], sizes = [16, 1], strides = [1, 1]} : vector<16x21xf32> to vector<16x1xf32>
    %23 = vector.extract_strided_slice %13 {offsets = [0, 9], sizes = [16, 1], strides = [1, 1]} : vector<16x21xf32> to vector<16x1xf32>
    %24 = vector.extract_strided_slice %13 {offsets = [0, 10], sizes = [16, 1], strides = [1, 1]} : vector<16x21xf32> to vector<16x1xf32>
    %25 = vector.extract_strided_slice %13 {offsets = [0, 11], sizes = [16, 1], strides = [1, 1]} : vector<16x21xf32> to vector<16x1xf32>
    %26 = vector.extract_strided_slice %13 {offsets = [0, 12], sizes = [16, 1], strides = [1, 1]} : vector<16x21xf32> to vector<16x1xf32>
    %27 = vector.extract_strided_slice %13 {offsets = [0, 13], sizes = [16, 1], strides = [1, 1]} : vector<16x21xf32> to vector<16x1xf32>
    %28 = vector.extract_strided_slice %13 {offsets = [0, 14], sizes = [16, 1], strides = [1, 1]} : vector<16x21xf32> to vector<16x1xf32>
    %29 = vector.extract_strided_slice %13 {offsets = [0, 15], sizes = [16, 1], strides = [1, 1]} : vector<16x21xf32> to vector<16x1xf32>
    %30 = vector.extract_strided_slice %13 {offsets = [0, 16], sizes = [16, 1], strides = [1, 1]} : vector<16x21xf32> to vector<16x1xf32>
    %31 = vector.extract_strided_slice %13 {offsets = [0, 17], sizes = [16, 1], strides = [1, 1]} : vector<16x21xf32> to vector<16x1xf32>
    %32 = vector.extract_strided_slice %13 {offsets = [0, 18], sizes = [16, 1], strides = [1, 1]} : vector<16x21xf32> to vector<16x1xf32>
    %33 = vector.extract_strided_slice %13 {offsets = [0, 19], sizes = [16, 1], strides = [1, 1]} : vector<16x21xf32> to vector<16x1xf32>
    %34 = vector.extract_strided_slice %13 {offsets = [0, 20], sizes = [16, 1], strides = [1, 1]} : vector<16x21xf32> to vector<16x1xf32>
    %35 = tpu.concatenate %14, %15, %16, %17, %18, %19, %20, %21, %22, %23, %24, %25, %26, %27, %28, %29 in 0 : vector<16x1xf32>, vector<16x1xf32>, vector<16x1xf32>, vector<16x1xf32>, vector<16x1xf32>, vector<16x1xf32>, vector<16x1xf32>, vector<16x1xf32>, vector<16x1xf32>, vector<16x1xf32>, vector<16x1xf32>, vector<16x1xf32>, vector<16x1xf32>, vector<16x1xf32>, vector<16x1xf32>, vector<16x1xf32> -> vector<256x1xf32>
    %36 = tpu.concatenate %30, %31, %32, %33, %34 in 0 : vector<16x1xf32>, vector<16x1xf32>, vector<16x1xf32>, vector<16x1xf32>, vector<16x1xf32> -> vector<80x1xf32>
    %37 = tpu.concatenate %35, %36 in 0 : vector<256x1xf32>, vector<80x1xf32> -> vector<336x1xf32>
    %c0_12 = arith.constant 0 : index
    %c0_13 = arith.constant 0 : index
    %38 = vector.load %arg6[%c0_12, %c0_13] : memref<1x336xf32, #tpu.memory_space<vmem>>, vector<1x336xf32>
    %cst_14 = arith.constant dense<0.000000e+00> : vector<1x1xf32>
    %39 = tpu.matmul %38, %37, %cst_14 {dimension_numbers = #tpu.dot_dimension_numbers<[1], [0], [0], [1], [0, 0, 1, 1], [], []>} : vector<1x336xf32>, vector<336x1xf32>, vector<1x1xf32> -> vector<1x1xf32>
    %cst_15 = arith.constant 0.000000e+00 : f32
    %40 = vector.broadcast %cst_15 : f32 to vector<1x1xf32>
    %41 = arith.maximumf %39, %40 : vector<1x1xf32>
    %c0_16 = arith.constant 0 : index
    %c0_17 = arith.constant 0 : index
    %42 = vector.load %arg7[%c0_16, %c0_17] : memref<16x1xf32, #tpu.memory_space<vmem>>, vector<16x1xf32>
    %cst_18 = arith.constant dense<0.000000e+00> : vector<16x1xf32>
    %43 = tpu.matmul %42, %41, %cst_18 {dimension_numbers = #tpu.dot_dimension_numbers<[1], [0], [0], [1], [0, 0, 1, 1], [], []>} : vector<16x1xf32>, vector<1x1xf32>, vector<16x1xf32> -> vector<16x1xf32>
    %44 = arith.negf %43 : vector<16x1xf32>
    %45 = math.exp %44 : vector<16x1xf32>
    %cst_19 = arith.constant 1.000000e+00 : f32
    %46 = vector.broadcast %cst_19 : f32 to vector<16x1xf32>
    %47 = arith.addf %46, %45 : vector<16x1xf32>
    %48 = arith.divf %46, %47 : vector<16x1xf32>
    %c0_20 = arith.constant 0 : index
    %c0_21 = arith.constant 0 : index
    %49 = vector.load %arg9[%c0_20, %c0_21] : memref<4x1xf32, #tpu.memory_space<vmem>>, vector<4x1xf32>
    %50 = vector.broadcast %49 : vector<4x1xf32> to vector<4x256xf32>
    %51 = arith.mulf %1, %50 : vector<4x256xf32>
    %c0_22 = arith.constant 0 : index
    %c0_23 = arith.constant 0 : index
    %52 = vector.load %arg10[%c0_22, %c0_23] : memref<4x1xf32, #tpu.memory_space<vmem>>, vector<4x1xf32>
    %53 = vector.broadcast %52 : vector<4x1xf32> to vector<4x256xf32>
    %54 = arith.addf %51, %53 : vector<4x256xf32>
    %cst_24 = arith.constant 0.000000e+00 : f32
    %55 = vector.broadcast %cst_24 : f32 to vector<4x256xf32>
    %56 = arith.maximumf %54, %55 : vector<4x256xf32>
    %c0_25 = arith.constant 0 : index
    %c0_26 = arith.constant 0 : index
    %57 = vector.load %arg18[%c0_25, %c0_26] : memref<16x4xf32, #tpu.memory_space<vmem>>, vector<16x4xf32>
    %cst_27 = arith.constant dense<0.000000e+00> : vector<16x256xf32>
    %58 = tpu.matmul %57, %56, %cst_27 {dimension_numbers = #tpu.dot_dimension_numbers<[1], [0], [0], [1], [0, 0, 1, 1], [], []>} : vector<16x4xf32>, vector<4x256xf32>, vector<16x256xf32> -> vector<16x256xf32>
    %c0_28 = arith.constant 0 : index
    %c0_29 = arith.constant 0 : index
    %59 = vector.load %arg11[%c0_28, %c0_29] : memref<4x4xf32, #tpu.memory_space<vmem>>, vector<4x4xf32>
    %cst_30 = arith.constant dense<0.000000e+00> : vector<4x256xf32>
    %60 = tpu.matmul %59, %56, %cst_30 {dimension_numbers = #tpu.dot_dimension_numbers<[1], [0], [0], [1], [0, 0, 1, 1], [], []>} : vector<4x4xf32>, vector<4x256xf32>, vector<4x256xf32> -> vector<4x256xf32>
    %c0_31 = arith.constant 0 : index
    %c0_32 = arith.constant 0 : index
    %61 = vector.load %arg12[%c0_31, %c0_32] : memref<4x1xf32, #tpu.memory_space<vmem>>, vector<4x1xf32>
    %62 = vector.broadcast %61 : vector<4x1xf32> to vector<4x256xf32>
    %63 = arith.mulf %60, %62 : vector<4x256xf32>
    %c0_33 = arith.constant 0 : index
    %c0_34 = arith.constant 0 : index
    %64 = vector.load %arg13[%c0_33, %c0_34] : memref<4x1xf32, #tpu.memory_space<vmem>>, vector<4x1xf32>
    %65 = vector.broadcast %64 : vector<4x1xf32> to vector<4x256xf32>
    %66 = arith.addf %63, %65 : vector<4x256xf32>
    %cst_35 = arith.constant 0.000000e+00 : f32
    %67 = vector.broadcast %cst_35 : f32 to vector<4x256xf32>
    %68 = arith.maximumf %66, %67 : vector<4x256xf32>
    %c17_i32 = arith.constant 17 : i32
    %69 = tpu.dynamic_rotate %68 by %c17_i32 dim 1 : vector<4x256xf32>, i32 -> vector<4x256xf32>
    %c0_36 = arith.constant 0 : index
    %c0_37 = arith.constant 0 : index
    %70 = vector.load %arg8[%c0_36, %c0_37] : memref<9x256xf32, #tpu.memory_space<vmem>>, vector<1x256xf32>
    %71 = vector.broadcast %70 : vector<1x256xf32> to vector<4x256xf32>
    %72 = arith.mulf %69, %71 : vector<4x256xf32>
    %c16_i32 = arith.constant 16 : i32
    %73 = tpu.dynamic_rotate %68 by %c16_i32 dim 1 : vector<4x256xf32>, i32 -> vector<4x256xf32>
    %c1 = arith.constant 1 : index
    %c0_38 = arith.constant 0 : index
    %74 = vector.load %arg8[%c1, %c0_38] : memref<9x256xf32, #tpu.memory_space<vmem>>, vector<1x256xf32>
    %75 = vector.broadcast %74 : vector<1x256xf32> to vector<4x256xf32>
    %76 = arith.mulf %73, %75 : vector<4x256xf32>
    %c15_i32 = arith.constant 15 : i32
    %77 = tpu.dynamic_rotate %68 by %c15_i32 dim 1 : vector<4x256xf32>, i32 -> vector<4x256xf32>
    %c2 = arith.constant 2 : index
    %c0_39 = arith.constant 0 : index
    %78 = vector.load %arg8[%c2, %c0_39] : memref<9x256xf32, #tpu.memory_space<vmem>>, vector<1x256xf32>
    %79 = vector.broadcast %78 : vector<1x256xf32> to vector<4x256xf32>
    %80 = arith.mulf %77, %79 : vector<4x256xf32>
    %c1_i32 = arith.constant 1 : i32
    %81 = tpu.dynamic_rotate %68 by %c1_i32 dim 1 : vector<4x256xf32>, i32 -> vector<4x256xf32>
    %c3 = arith.constant 3 : index
    %c0_40 = arith.constant 0 : index
    %82 = vector.load %arg8[%c3, %c0_40] : memref<9x256xf32, #tpu.memory_space<vmem>>, vector<1x256xf32>
    %83 = vector.broadcast %82 : vector<1x256xf32> to vector<4x256xf32>
    %84 = arith.mulf %81, %83 : vector<4x256xf32>
    %c4 = arith.constant 4 : index
    %c0_41 = arith.constant 0 : index
    %85 = vector.load %arg8[%c4, %c0_41] : memref<9x256xf32, #tpu.memory_space<vmem>>, vector<1x256xf32>
    %86 = vector.broadcast %85 : vector<1x256xf32> to vector<4x256xf32>
    %87 = arith.mulf %68, %86 : vector<4x256xf32>
    %c255_i32 = arith.constant 255 : i32
    %88 = tpu.dynamic_rotate %68 by %c255_i32 dim 1 : vector<4x256xf32>, i32 -> vector<4x256xf32>
    %c5 = arith.constant 5 : index
    %c0_42 = arith.constant 0 : index
    %89 = vector.load %arg8[%c5, %c0_42] : memref<9x256xf32, #tpu.memory_space<vmem>>, vector<1x256xf32>
    %90 = vector.broadcast %89 : vector<1x256xf32> to vector<4x256xf32>
    %91 = arith.mulf %88, %90 : vector<4x256xf32>
    %c241_i32 = arith.constant 241 : i32
    %92 = tpu.dynamic_rotate %68 by %c241_i32 dim 1 : vector<4x256xf32>, i32 -> vector<4x256xf32>
    %c6 = arith.constant 6 : index
    %c0_43 = arith.constant 0 : index
    %93 = vector.load %arg8[%c6, %c0_43] : memref<9x256xf32, #tpu.memory_space<vmem>>, vector<1x256xf32>
    %94 = vector.broadcast %93 : vector<1x256xf32> to vector<4x256xf32>
    %95 = arith.mulf %92, %94 : vector<4x256xf32>
    %c240_i32 = arith.constant 240 : i32
    %96 = tpu.dynamic_rotate %68 by %c240_i32 dim 1 : vector<4x256xf32>, i32 -> vector<4x256xf32>
    %c7 = arith.constant 7 : index
    %c0_44 = arith.constant 0 : index
    %97 = vector.load %arg8[%c7, %c0_44] : memref<9x256xf32, #tpu.memory_space<vmem>>, vector<1x256xf32>
    %98 = vector.broadcast %97 : vector<1x256xf32> to vector<4x256xf32>
    %99 = arith.mulf %96, %98 : vector<4x256xf32>
    %c239_i32 = arith.constant 239 : i32
    %100 = tpu.dynamic_rotate %68 by %c239_i32 dim 1 : vector<4x256xf32>, i32 -> vector<4x256xf32>
    %c8 = arith.constant 8 : index
    %c0_45 = arith.constant 0 : index
    %101 = vector.load %arg8[%c8, %c0_45] : memref<9x256xf32, #tpu.memory_space<vmem>>, vector<1x256xf32>
    %102 = vector.broadcast %101 : vector<1x256xf32> to vector<4x256xf32>
    %103 = arith.mulf %100, %102 : vector<4x256xf32>
    %104 = tpu.concatenate %72, %76, %80, %84, %87, %91, %95, %99, %103 in 0 : vector<4x256xf32>, vector<4x256xf32>, vector<4x256xf32>, vector<4x256xf32>, vector<4x256xf32>, vector<4x256xf32>, vector<4x256xf32>, vector<4x256xf32>, vector<4x256xf32> -> vector<36x256xf32>
    %c0_46 = arith.constant 0 : index
    %c0_47 = arith.constant 0 : index
    %105 = vector.load %arg14[%c0_46, %c0_47] : memref<4x36xf32, #tpu.memory_space<vmem>>, vector<4x36xf32>
    %cst_48 = arith.constant dense<0.000000e+00> : vector<4x256xf32>
    %106 = tpu.matmul %105, %104, %cst_48 {dimension_numbers = #tpu.dot_dimension_numbers<[1], [0], [0], [1], [0, 0, 1, 1], [], []>} : vector<4x36xf32>, vector<36x256xf32>, vector<4x256xf32> -> vector<4x256xf32>
    %c0_49 = arith.constant 0 : index
    %c0_50 = arith.constant 0 : index
    %107 = vector.load %arg15[%c0_49, %c0_50] : memref<4x1xf32, #tpu.memory_space<vmem>>, vector<4x1xf32>
    %108 = vector.broadcast %107 : vector<4x1xf32> to vector<4x256xf32>
    %109 = arith.mulf %106, %108 : vector<4x256xf32>
    %c0_51 = arith.constant 0 : index
    %c0_52 = arith.constant 0 : index
    %110 = vector.load %arg16[%c0_51, %c0_52] : memref<4x1xf32, #tpu.memory_space<vmem>>, vector<4x1xf32>
    %111 = vector.broadcast %110 : vector<4x1xf32> to vector<4x256xf32>
    %112 = arith.addf %109, %111 : vector<4x256xf32>
    %cst_53 = arith.constant 0.000000e+00 : f32
    %113 = vector.broadcast %cst_53 : f32 to vector<4x256xf32>
    %114 = arith.maximumf %112, %113 : vector<4x256xf32>
    %c0_54 = arith.constant 0 : index
    %c0_55 = arith.constant 0 : index
    %115 = vector.load %arg17[%c0_54, %c0_55] : memref<16x4xf32, #tpu.memory_space<vmem>>, vector<16x4xf32>
    %cst_56 = arith.constant dense<0.000000e+00> : vector<16x256xf32>
    %116 = tpu.matmul %115, %114, %cst_56 {dimension_numbers = #tpu.dot_dimension_numbers<[1], [0], [0], [1], [0, 0, 1, 1], [], []>} : vector<16x4xf32>, vector<4x256xf32>, vector<16x256xf32> -> vector<16x256xf32>
    %117 = vector.broadcast %48 : vector<16x1xf32> to vector<16x256xf32>
    %118 = arith.mulf %116, %117 : vector<16x256xf32>
    %119 = arith.addf %118, %58 : vector<16x256xf32>
    %c0_57 = arith.constant 0 : index
    %c0_58 = arith.constant 0 : index
    %c0_59 = arith.constant 0 : index
    %120 = vector.load %arg19[%c0_57, %c0_58, %c0_59] : memref<1x16x256xf32, #tpu.memory_space<vmem>>, vector<1x16x256xf32>
    %121 = vector.shape_cast %120 : vector<1x16x256xf32> to vector<16x256xf32>
    %122 = vector.shape_cast %119 : vector<16x256xf32> to vector<1x16x256xf32>
    tpu.vector_store %arg19[%c0_57, %c0_58, %c0_59], %122 {strides = array<i32>} : memref<1x16x256xf32, #tpu.memory_space<vmem>>, vector<1x16x256xf32>,
    return
  }
  func.func @transform_0(%arg0: i32) -> (i32, i32, i32) {
    %c0_i32 = arith.constant 0 : i32
    %c0_i32_0 = arith.constant 0 : i32
    %c0_i32_1 = arith.constant 0 : i32
    return %arg0, %c0_i32, %c0_i32_0 : i32, i32, i32
  }
  func.func @transform_1(%arg0: i32) -> (i32, i32) {
    %c0_i32 = arith.constant 0 : i32
    %c0_i32_0 = arith.constant 0 : i32
    %c0_i32_1 = arith.constant 0 : i32
    return %c0_i32, %c0_i32_0 : i32, i32
  }
  func.func @transform_2(%arg0: i32) -> (i32, i32) {
    %c0_i32 = arith.constant 0 : i32
    %c0_i32_0 = arith.constant 0 : i32
    %c0_i32_1 = arith.constant 0 : i32
    return %c0_i32, %c0_i32_0 : i32, i32
  }
  func.func @transform_3(%arg0: i32) -> (i32, i32) {
    %c0_i32 = arith.constant 0 : i32
    %c0_i32_0 = arith.constant 0 : i32
    %c0_i32_1 = arith.constant 0 : i32
    return %c0_i32, %c0_i32_0 : i32, i32
  }
  func.func @transform_4(%arg0: i32) -> (i32, i32) {
    %c0_i32 = arith.constant 0 : i32
    %c0_i32_0 = arith.constant 0 : i32
    %c0_i32_1 = arith.constant 0 : i32
    return %c0_i32, %c0_i32_0 : i32, i32
  }
  func.func @transform_5(%arg0: i32) -> (i32, i32) {
    %c0_i32 = arith.constant 0 : i32
    %c0_i32_0 = arith.constant 0 : i32
    %c0_i32_1 = arith.constant 0 : i32
    return %c0_i32, %c0_i32_0 : i32, i32
  }
  func.func @transform_6(%arg0: i32) -> (i32, i32) {
    %c0_i32 = arith.constant 0 : i32
    %c0_i32_0 = arith.constant 0 : i32
    %c0_i32_1 = arith.constant 0 : i32
    return %c0_i32, %c0_i32_0 : i32, i32
  }
  func.func @transform_7(%arg0: i32) -> (i32, i32) {
    %c0_i32 = arith.constant 0 : i32
    %c0_i32_0 = arith.constant 0 : i32
    %c0_i32_1 = arith.constant 0 : i32
    return %c0_i32, %c0_i32_0 : i32, i32
  }
  func.func @transform_8(%arg0: i32) -> (i32, i32) {
    %c0_i32 = arith.constant 0 : i32
    %c0_i32_0 = arith.constant 0 : i32
    %c0_i32_1 = arith.constant 0 : i32
    return %c0_i32, %c0_i32_0 : i32, i32
  }
  func.func @transform_9(%arg0: i32) -> (i32, i32) {
    %c0_i32 = arith.constant 0 : i32
    %c0_i32_0 = arith.constant 0 : i32
    %c0_i32_1 = arith.constant 0 : i32
    return %c0_i32, %c0_i32_0 : i32, i32
  }
  func.func @transform_10(%arg0: i32) -> (i32, i32) {
    %c0_i32 = arith.constant 0 : i32
    %c0_i32_0 = arith.constant 0 : i32
    %c0_i32_1 = arith.constant 0 : i32
    return %c0_i32, %c0_i32_0 : i32, i32
  }
  func.func @transform_11(%arg0: i32) -> (i32, i32) {
    %c0_i32 = arith.constant 0 : i32
    %c0_i32_0 = arith.constant 0 : i32
    %c0_i32_1 = arith.constant 0 : i32
    return %c0_i32, %c0_i32_0 : i32, i32
  }
  func.func @transform_12(%arg0: i32) -> (i32, i32) {
    %c0_i32 = arith.constant 0 : i32
    %c0_i32_0 = arith.constant 0 : i32
    %c0_i32_1 = arith.constant 0 : i32
    return %c0_i32, %c0_i32_0 : i32, i32
  }
  func.func @transform_13(%arg0: i32) -> (i32, i32) {
    %c0_i32 = arith.constant 0 : i32
    %c0_i32_0 = arith.constant 0 : i32
    %c0_i32_1 = arith.constant 0 : i32
    return %c0_i32, %c0_i32_0 : i32, i32
  }
  func.func @transform_14(%arg0: i32) -> (i32, i32) {
    %c0_i32 = arith.constant 0 : i32
    %c0_i32_0 = arith.constant 0 : i32
    %c0_i32_1 = arith.constant 0 : i32
    return %c0_i32, %c0_i32_0 : i32, i32
  }
  func.func @transform_15(%arg0: i32) -> (i32, i32) {
    %c0_i32 = arith.constant 0 : i32
    %c0_i32_0 = arith.constant 0 : i32
    %c0_i32_1 = arith.constant 0 : i32
    return %c0_i32, %c0_i32_0 : i32, i32
  }
  func.func @transform_16(%arg0: i32) -> (i32, i32) {
    %c0_i32 = arith.constant 0 : i32
    %c0_i32_0 = arith.constant 0 : i32
    %c0_i32_1 = arith.constant 0 : i32
    return %c0_i32, %c0_i32_0 : i32, i32
  }
  func.func @transform_17(%arg0: i32) -> (i32, i32) {
    %c0_i32 = arith.constant 0 : i32
    %c0_i32_0 = arith.constant 0 : i32
    %c0_i32_1 = arith.constant 0 : i32
    return %c0_i32, %c0_i32_0 : i32, i32
  }
  func.func @transform_18(%arg0: i32) -> (i32, i32, i32) {
    %c0_i32 = arith.constant 0 : i32
    %c0_i32_0 = arith.constant 0 : i32
    %c0_i32_1 = arith.constant 0 : i32
    return %arg0, %c0_i32, %c0_i32_0 : i32, i32, i32
  }
}

</mosaic_0001>

<llo_original>
// kernel: tpu_custom_call.1
$region0: #{tpu_custom_call.1}
  #allocation0 [shape = 'u32[]', space=smem, size = 0x4, offset = 0x4, fixed_abs, tag = 'smem constant byte address 0x4 - core index']
  #allocation1 [shape = 'u32[144,128]{1,0:T(1,128)}', space=vmem, size = 0x12000, scoped, tag = 'internal scratch']
  %s0 = inlined_call_operand.vmem [shape: f32[2,4,256], index: 0, kind: input, shape index: {}]
  %s1 = inlined_call_operand.vmem [shape: f32[16,4], index: 1, kind: input, shape index: {}]
  %s2 = inlined_call_operand.vmem [shape: f32[16,1], index: 2, kind: input, shape index: {}]
  %s3 = inlined_call_operand.vmem [shape: f32[16,1], index: 3, kind: input, shape index: {}]
  %s4 = inlined_call_operand.vmem [shape: f32[256,21], index: 4, kind: input, shape index: {}]
  %s5 = inlined_call_operand.vmem [shape: f32[1,336], index: 5, kind: input, shape index: {}]
  %s6 = inlined_call_operand.vmem [shape: f32[16,1], index: 6, kind: input, shape index: {}]
  %s7 = inlined_call_operand.vmem [shape: f32[9,256], index: 7, kind: input, shape index: {}]
  %s8 = inlined_call_operand.vmem [shape: f32[4,1], index: 8, kind: input, shape index: {}]
  %s9 = inlined_call_operand.vmem [shape: f32[4,1], index: 9, kind: input, shape index: {}]
  %s10 = inlined_call_operand.vmem [shape: f32[4,4], index: 10, kind: input, shape index: {}]
  %s11 = inlined_call_operand.vmem [shape: f32[4,1], index: 11, kind: input, shape index: {}]
  %s12 = inlined_call_operand.vmem [shape: f32[4,1], index: 12, kind: input, shape index: {}]
  %s13 = inlined_call_operand.vmem [shape: f32[4,36], index: 13, kind: input, shape index: {}]
  %s14 = inlined_call_operand.vmem [shape: f32[4,1], index: 14, kind: input, shape index: {}]
  %s15 = inlined_call_operand.vmem [shape: f32[4,1], index: 15, kind: input, shape index: {}]
  %s16 = inlined_call_operand.vmem [shape: f32[16,4], index: 16, kind: input, shape index: {}]
  %s17 = inlined_call_operand.vmem [shape: f32[16,4], index: 17, kind: input, shape index: {}]
  %s18 = inlined_call_operand.hbm [shape: f32[2,16,256], index: 18, kind: output, shape index: {}]
  %s19 = sld [smem:[#allocation0]]
  $region105: #{tpu_custom_call.1} parent=0
    _
  %s21 = ssub.s32 1, %s19
  %s22 = scalar_select 0, %s21, %s19
  $region1: #{tpu_custom_call.1} parent=0
    #allocation2 [shape = 'u8[32768]{0}', space=vmem, size = 0x8000, scoped, tag = 'output window, operand 0']
    #allocation3 [shape = 's32[2]{0}', space=sflag, size = 0x8, scoped, tag = 'scoped memory for tpu_custom_call.1']
    %23 = vsyncpa [#allocation3], 0
    %s24 = scalar_lea.sflag [#allocation3], 1
    %25 = vsyncpa %s24, 0
    loop: start=0, step=1, limit=4
    $region2: #{tpu_custom_call.1} parent=1 // loop_pre_header
      _
    $region3: #{tpu_custom_call.1} parent=1 // loop_header
      %s27 = sphi 0, %s31
      %p28 = scmp.ge.s32.totalorder %s27, 4
      %s37 = sphi 0, %s39
      %s40 = sphi 0, %s37
      %s41 = sphi 0, %s40
      %s57 = sphi 0, %s41
      %s61 = sphi 0, %s61
      %s63 = sphi 0, %s61
      %s64 = sphi 0, %s63
      %s78 = sphi 0, %s64
      %s82 = sphi 0, %s82
      %s84 = sphi 0, %s82
      %s85 = sphi 0, %s84
      %s99 = sphi 0, %s85
      %s103 = sphi 0, %s103
      %s105 = sphi 0, %s103
      %s106 = sphi 0, %s105
      %s120 = sphi 0, %s106
      %s124 = sphi 0, %s124
      %s126 = sphi 0, %s124
      %s127 = sphi 0, %s126
      %s141 = sphi 0, %s127
      %s145 = sphi 0, %s145
      %s147 = sphi 0, %s145
      %s148 = sphi 0, %s147
      %s162 = sphi 0, %s148
      %s166 = sphi 0, %s166
      %s168 = sphi 0, %s166
      %s169 = sphi 0, %s168
      %s183 = sphi 0, %s169
      %s187 = sphi 0, %s187
      %s189 = sphi 0, %s187
      %s190 = sphi 0, %s189
      %s204 = sphi 0, %s190
      %s208 = sphi 0, %s208
      %s210 = sphi 0, %s208
      %s211 = sphi 0, %s210
      %s225 = sphi 0, %s211
      %s229 = sphi 0, %s229
      %s231 = sphi 0, %s229
      %s232 = sphi 0, %s231
      %s246 = sphi 0, %s232
      %s250 = sphi 0, %s250
      %s252 = sphi 0, %s250
      %s253 = sphi 0, %s252
      %s267 = sphi 0, %s253
      %s271 = sphi 0, %s271
      %s273 = sphi 0, %s271
      %s274 = sphi 0, %s273
      %s288 = sphi 0, %s274
      %s292 = sphi 0, %s292
      %s294 = sphi 0, %s292
      %s295 = sphi 0, %s294
      %s309 = sphi 0, %s295
      %s313 = sphi 0, %s313
      %s315 = sphi 0, %s313
      %s316 = sphi 0, %s315
      %s330 = sphi 0, %s316
      %s334 = sphi 0, %s334
      %s336 = sphi 0, %s334
      %s337 = sphi 0, %s336
      %s351 = sphi 0, %s337
      %s355 = sphi 0, %s355
      %s357 = sphi 0, %s355
      %s358 = sphi 0, %s357
      %s372 = sphi 0, %s358
      %s376 = sphi 0, %s376
      %s378 = sphi 0, %s376
      %s379 = sphi 0, %s378
      %s393 = sphi 0, %s379
      %s397 = sphi 0, %s397
      %s399 = sphi 0, %s397
      %s400 = sphi 0, %s399
      %s414 = sphi 0, %s400
      %s420 = sphi 0, %s422
      %s423 = sphi 0, %s420
      %s424 = sphi 0, %s423
      %s440 = sphi 0, %s424
    $region4: #{tpu_custom_call.1} parent=1 // loop_header_branch
      %30 = sbr.rel (%p28) target = $region8
    $region5: #{tpu_custom_call.1} parent=1 // loop_body
      %s32 = ssub.s32 %s27, 1
      %s33 = ssub.s32 %s27, 2
      %s34 = sadd.s32 %s27, 1
      %s35 = ssub.s32 %s27, %s34
      %p36 = scmp.eq.s32.totalorder %s35, 0
      %s38 = sadd.s32 %s37, 1
      %s39 = scalar_select %p36, %s37, %s38
      %p42 = pneg %p36
      %p43 = scmp.eq.s32.totalorder %s27, 1
      %p44 = por %p42, %p43
      %p45 = scmp.ne.s32.totalorder %s37, %s40
      %p46 = scmp.eq.s32.totalorder %s27, 0
      %p47 = por %p45, %p46
      %p48 = scmp.ne.s32.totalorder %s37, %s40
      %p49 = scmp.eq.s32.totalorder %s32, 1
      %p50 = por %p48, %p49
      %p51 = scmp.ne.s32.totalorder %s40, %s41
      %p52 = scmp.eq.s32.totalorder %s32, 0
      %p53 = por %p51, %p52
      %p54 = scmp.ne.s32.totalorder %s40, %s41
      %p55 = scmp.eq.s32.totalorder %s33, 1
      %p56 = por %p54, %p55
      %p58 = scmp.ne.s32.totalorder %s41, %s57
      %p59 = scmp.eq.s32.totalorder %s33, 0
      %p60 = por %p58, %p59
      %s62 = sadd.s32 %s61, 1
      %p65 = scmp.eq.s32.totalorder %s27, 1
      %p66 = scmp.ne.s32.totalorder %s61, %s63
      %p67 = scmp.eq.s32.totalorder %s27, 0
      %p68 = por %p66, %p67
      %p69 = scmp.ne.s32.totalorder %s61, %s63
      %p70 = scmp.eq.s32.totalorder %s32, 1
      %p71 = por %p69, %p70
      %p72 = scmp.ne.s32.totalorder %s63, %s64
      %p73 = scmp.eq.s32.totalorder %s32, 0
      %p74 = por %p72, %p73
      %p75 = scmp.ne.s32.totalorder %s63, %s64
      %p76 = scmp.eq.s32.totalorder %s33, 1
      %p77 = por %p75, %p76
      %p79 = scmp.ne.s32.totalorder %s64, %s78
      %p80 = scmp.eq.s32.totalorder %s33, 0
      %p81 = por %p79, %p80
      %s83 = sadd.s32 %s82, 1
      %p86 = scmp.eq.s32.totalorder %s27, 1
      %p87 = scmp.ne.s32.totalorder %s82, %s84
      %p88 = scmp.eq.s32.totalorder %s27, 0
      %p89 = por %p87, %p88
      %p90 = scmp.ne.s32.totalorder %s82, %s84
      %p91 = scmp.eq.s32.totalorder %s32, 1
      %p92 = por %p90, %p91
      %p93 = scmp.ne.s32.totalorder %s84, %s85
      %p94 = scmp.eq.s32.totalorder %s32, 0
      %p95 = por %p93, %p94
      %p96 = scmp.ne.s32.totalorder %s84, %s85
      %p97 = scmp.eq.s32.totalorder %s33, 1
      %p98 = por %p96, %p97
      %p100 = scmp.ne.s32.totalorder %s85, %s99
      %p101 = scmp.eq.s32.totalorder %s33, 0
      %p102 = por %p100, %p101
      %s104 = sadd.s32 %s103, 1
      %p107 = scmp.eq.s32.totalorder %s27, 1
      %p108 = scmp.ne.s32.totalorder %s103, %s105
      %p109 = scmp.eq.s32.totalorder %s27, 0
      %p110 = por %p108, %p109
      %p111 = scmp.ne.s32.totalorder %s103, %s105
      %p112 = scmp.eq.s32.totalorder %s32, 1
      %p113 = por %p111, %p112
      %p114 = scmp.ne.s32.totalorder %s105, %s106
      %p115 = scmp.eq.s32.totalorder %s32, 0
      %p116 = por %p114, %p115
      %p117 = scmp.ne.s32.totalorder %s105, %s106
      %p118 = scmp.eq.s32.totalorder %s33, 1
      %p119 = por %p117, %p118
      %p121 = scmp.ne.s32.totalorder %s106, %s120
      %p122 = scmp.eq.s32.totalorder %s33, 0
      %p123 = por %p121, %p122
      %s125 = sadd.s32 %s124, 1
      %p128 = scmp.eq.s32.totalorder %s27, 1
      %p129 = scmp.ne.s32.totalorder %s124, %s126
      %p130 = scmp.eq.s32.totalorder %s27, 0
      %p131 = por %p129, %p130
      %p132 = scmp.ne.s32.totalorder %s124, %s126
      %p133 = scmp.eq.s32.totalorder %s32, 1
      %p134 = por %p132, %p133
      %p135 = scmp.ne.s32.totalorder %s126, %s127
      %p136 = scmp.eq.s32.totalorder %s32, 0
      %p137 = por %p135, %p136
      %p138 = scmp.ne.s32.totalorder %s126, %s127
      %p139 = scmp.eq.s32.totalorder %s33, 1
      %p140 = por %p138, %p139
      %p142 = scmp.ne.s32.totalorder %s127, %s141
      %p143 = scmp.eq.s32.totalorder %s33, 0
      %p144 = por %p142, %p143
      %s146 = sadd.s32 %s145, 1
      %p149 = scmp.eq.s32.totalorder %s27, 1
      %p150 = scmp.ne.s32.totalorder %s145, %s147
      %p151 = scmp.eq.s32.totalorder %s27, 0
      %p152 = por %p150, %p151
      %p153 = scmp.ne.s32.totalorder %s145, %s147
      %p154 = scmp.eq.s32.totalorder %s32, 1
      %p155 = por %p153, %p154
      %p156 = scmp.ne.s32.totalorder %s147, %s148
      %p157 = scmp.eq.s32.totalorder %s32, 0
      %p158 = por %p156, %p157
      %p159 = scmp.ne.s32.totalorder %s147, %s148
      %p160 = scmp.eq.s32.totalorder %s33, 1
      %p161 = por %p159, %p160
      %p163 = scmp.ne.s32.totalorder %s148, %s162
      %p164 = scmp.eq.s32.totalorder %s33, 0
      %p165 = por %p163, %p164
      %s167 = sadd.s32 %s166, 1
      %p170 = scmp.eq.s32.totalorder %s27, 1
      %p171 = scmp.ne.s32.totalorder %s166, %s168
      %p172 = scmp.eq.s32.totalorder %s27, 0
      %p173 = por %p171, %p172
      %p174 = scmp.ne.s32.totalorder %s166, %s168
      %p175 = scmp.eq.s32.totalorder %s32, 1
      %p176 = por %p174, %p175
      %p177 = scmp.ne.s32.totalorder %s168, %s169
      %p178 = scmp.eq.s32.totalorder %s32, 0
      %p179 = por %p177, %p178
      %p180 = scmp.ne.s32.totalorder %s168, %s169
      %p181 = scmp.eq.s32.totalorder %s33, 1
      %p182 = por %p180, %p181
      %p184 = scmp.ne.s32.totalorder %s169, %s183
      %p185 = scmp.eq.s32.totalorder %s33, 0
      %p186 = por %p184, %p185
      %s188 = sadd.s32 %s187, 1
      %p191 = scmp.eq.s32.totalorder %s27, 1
      %p192 = scmp.ne.s32.totalorder %s187, %s189
      %p193 = scmp.eq.s32.totalorder %s27, 0
      %p194 = por %p192, %p193
      %p195 = scmp.ne.s32.totalorder %s187, %s189
      %p196 = scmp.eq.s32.totalorder %s32, 1
      %p197 = por %p195, %p196
      %p198 = scmp.ne.s32.totalorder %s189, %s190
      %p199 = scmp.eq.s32.totalorder %s32, 0
      %p200 = por %p198, %p199
      %p201 = scmp.ne.s32.totalorder %s189, %s190
      %p202 = scmp.eq.s32.totalorder %s33, 1
      %p203 = por %p201, %p202
      %p205 = scmp.ne.s32.totalorder %s190, %s204
      %p206 = scmp.eq.s32.totalorder %s33, 0
      %p207 = por %p205, %p206
      %s209 = sadd.s32 %s208, 1
      %p212 = scmp.eq.s32.totalorder %s27, 1
      %p213 = scmp.ne.s32.totalorder %s208, %s210
      %p214 = scmp.eq.s32.totalorder %s27, 0
      %p215 = por %p213, %p214
      %p216 = scmp.ne.s32.totalorder %s208, %s210
      %p217 = scmp.eq.s32.totalorder %s32, 1
      %p218 = por %p216, %p217
      %p219 = scmp.ne.s32.totalorder %s210, %s211
      %p220 = scmp.eq.s32.totalorder %s32, 0
      %p221 = por %p219, %p220
      %p222 = scmp.ne.s32.totalorder %s210, %s211
      %p223 = scmp.eq.s32.totalorder %s33, 1
      %p224 = por %p222, %p223
      %p226 = scmp.ne.s32.totalorder %s211, %s225
      %p227 = scmp.eq.s32.totalorder %s33, 0
      %p228 = por %p226, %p227
      %s230 = sadd.s32 %s229, 1
      %p233 = scmp.eq.s32.totalorder %s27, 1
      %p234 = scmp.ne.s32.totalorder %s229, %s231
      %p235 = scmp.eq.s32.totalorder %s27, 0
      %p236 = por %p234, %p235
      %p237 = scmp.ne.s32.totalorder %s229, %s231
      %p238 = scmp.eq.s32.totalorder %s32, 1
      %p239 = por %p237, %p238
      %p240 = scmp.ne.s32.totalorder %s231, %s232
      %p241 = scmp.eq.s32.totalorder %s32, 0
      %p242 = por %p240, %p241
      %p243 = scmp.ne.s32.totalorder %s231, %s232
      %p244 = scmp.eq.s32.totalorder %s33, 1
      %p245 = por %p243, %p244
      %p247 = scmp.ne.s32.totalorder %s232, %s246
      %p248 = scmp.eq.s32.totalorder %s33, 0
      %p249 = por %p247, %p248
      %s251 = sadd.s32 %s250, 1
      %p254 = scmp.eq.s32.totalorder %s27, 1
      %p255 = scmp.ne.s32.totalorder %s250, %s252
      %p256 = scmp.eq.s32.totalorder %s27, 0
      %p257 = por %p255, %p256
      %p258 = scmp.ne.s32.totalorder %s250, %s252
      %p259 = scmp.eq.s32.totalorder %s32, 1
      %p260 = por %p258, %p259
      %p261 = scmp.ne.s32.totalorder %s252, %s253
      %p262 = scmp.eq.s32.totalorder %s32, 0
      %p263 = por %p261, %p262
      %p264 = scmp.ne.s32.totalorder %s252, %s253
      %p265 = scmp.eq.s32.totalorder %s33, 1
      %p266 = por %p264, %p265
      %p268 = scmp.ne.s32.totalorder %s253, %s267
      %p269 = scmp.eq.s32.totalorder %s33, 0
      %p270 = por %p268, %p269
      %s272 = sadd.s32 %s271, 1
      %p275 = scmp.eq.s32.totalorder %s27, 1
      %p276 = scmp.ne.s32.totalorder %s271, %s273
      %p277 = scmp.eq.s32.totalorder %s27, 0
      %p278 = por %p276, %p277
      %p279 = scmp.ne.s32.totalorder %s271, %s273
      %p280 = scmp.eq.s32.totalorder %s32, 1
      %p281 = por %p279, %p280
      %p282 = scmp.ne.s32.totalorder %s273, %s274
      %p283 = scmp.eq.s32.totalorder %s32, 0
      %p284 = por %p282, %p283
      %p285 = scmp.ne.s32.totalorder %s273, %s274
      %p286 = scmp.eq.s32.totalorder %s33, 1
      %p287 = por %p285, %p286
      %p289 = scmp.ne.s32.totalorder %s274, %s288
      %p290 = scmp.eq.s32.totalorder %s33, 0
      %p291 = por %p289, %p290
      %s293 = sadd.s32 %s292, 1
      %p296 = scmp.eq.s32.totalorder %s27, 1
      %p297 = scmp.ne.s32.totalorder %s292, %s294
      %p298 = scmp.eq.s32.totalorder %s27, 0
      %p299 = por %p297, %p298
      %p300 = scmp.ne.s32.totalorder %s292, %s294
      %p301 = scmp.eq.s32.totalorder %s32, 1
      %p302 = por %p300, %p301
      %p303 = scmp.ne.s32.totalorder %s294, %s295
      %p304 = scmp.eq.s32.totalorder %s32, 0
      %p305 = por %p303, %p304
      %p306 = scmp.ne.s32.totalorder %s294, %s295
      %p307 = scmp.eq.s32.totalorder %s33, 1
      %p308 = por %p306, %p307
      %p310 = scmp.ne.s32.totalorder %s295, %s309
      %p311 = scmp.eq.s32.totalorder %s33, 0
      %p312 = por %p310, %p311
      %s314 = sadd.s32 %s313, 1
      %p317 = scmp.eq.s32.totalorder %s27, 1
      %p318 = scmp.ne.s32.totalorder %s313, %s315
      %p319 = scmp.eq.s32.totalorder %s27, 0
      %p320 = por %p318, %p319
      %p321 = scmp.ne.s32.totalorder %s313, %s315
      %p322 = scmp.eq.s32.totalorder %s32, 1
      %p323 = por %p321, %p322
      %p324 = scmp.ne.s32.totalorder %s315, %s316
      %p325 = scmp.eq.s32.totalorder %s32, 0
      %p326 = por %p324, %p325
      %p327 = scmp.ne.s32.totalorder %s315, %s316
      %p328 = scmp.eq.s32.totalorder %s33, 1
      %p329 = por %p327, %p328
      %p331 = scmp.ne.s32.totalorder %s316, %s330
      %p332 = scmp.eq.s32.totalorder %s33, 0
      %p333 = por %p331, %p332
      %s335 = sadd.s32 %s334, 1
      %p338 = scmp.eq.s32.totalorder %s27, 1
      %p339 = scmp.ne.s32.totalorder %s334, %s336
      %p340 = scmp.eq.s32.totalorder %s27, 0
      %p341 = por %p339, %p340
      %p342 = scmp.ne.s32.totalorder %s334, %s336
      %p343 = scmp.eq.s32.totalorder %s32, 1
      %p344 = por %p342, %p343
      %p345 = scmp.ne.s32.totalorder %s336, %s337
      %p346 = scmp.eq.s32.totalorder %s32, 0
      %p347 = por %p345, %p346
      %p348 = scmp.ne.s32.totalorder %s336, %s337
      %p349 = scmp.eq.s32.totalorder %s33, 1
      %p350 = por %p348, %p349
      %p352 = scmp.ne.s32.totalorder %s337, %s351
      %p353 = scmp.eq.s32.totalorder %s33, 0
      %p354 = por %p352, %p353
      %s356 = sadd.s32 %s355, 1
      %p359 = scmp.eq.s32.totalorder %s27, 1
      %p360 = scmp.ne.s32.totalorder %s355, %s357
      %p361 = scmp.eq.s32.totalorder %s27, 0
      %p362 = por %p360, %p361
      %p363 = scmp.ne.s32.totalorder %s355, %s357
      %p364 = scmp.eq.s32.totalorder %s32, 1
      %p365 = por %p363, %p364
      %p366 = scmp.ne.s32.totalorder %s357, %s358
      %p367 = scmp.eq.s32.totalorder %s32, 0
      %p368 = por %p366, %p367
      %p369 = scmp.ne.s32.totalorder %s357, %s358
      %p370 = scmp.eq.s32.totalorder %s33, 1
      %p371 = por %p369, %p370
      %p373 = scmp.ne.s32.totalorder %s358, %s372
      %p374 = scmp.eq.s32.totalorder %s33, 0
      %p375 = por %p373, %p374
      %s377 = sadd.s32 %s376, 1
      %p380 = scmp.eq.s32.totalorder %s27, 1
      %p381 = scmp.ne.s32.totalorder %s376, %s378
      %p382 = scmp.eq.s32.totalorder %s27, 0
      %p383 = por %p381, %p382
      %p384 = scmp.ne.s32.totalorder %s376, %s378
      %p385 = scmp.eq.s32.totalorder %s32, 1
      %p386 = por %p384, %p385
      %p387 = scmp.ne.s32.totalorder %s378, %s379
      %p388 = scmp.eq.s32.totalorder %s32, 0
      %p389 = por %p387, %p388
      %p390 = scmp.ne.s32.totalorder %s378, %s379
      %p391 = scmp.eq.s32.totalorder %s33, 1
      %p392 = por %p390, %p391
      %p394 = scmp.ne.s32.totalorder %s379, %s393
      %p395 = scmp.eq.s32.totalorder %s33, 0
      %p396 = por %p394, %p395
      %s398 = sadd.s32 %s397, 1
      %p401 = scmp.eq.s32.totalorder %s27, 1
      %p402 = scmp.ne.s32.totalorder %s397, %s399
      %p403 = scmp.eq.s32.totalorder %s27, 0
      %p404 = por %p402, %p403
      %p405 = scmp.ne.s32.totalorder %s397, %s399
      %p406 = scmp.eq.s32.totalorder %s32, 1
      %p407 = por %p405, %p406
      %p408 = scmp.ne.s32.totalorder %s399, %s400
      %p409 = scmp.eq.s32.totalorder %s32, 0
      %p410 = por %p408, %p409
      %p411 = scmp.ne.s32.totalorder %s399, %s400
      %p412 = scmp.eq.s32.totalorder %s33, 1
      %p413 = por %p411, %p412
      %p415 = scmp.ne.s32.totalorder %s400, %s414
      %p416 = scmp.eq.s32.totalorder %s33, 0
      %p417 = por %p415, %p416
      %s418 = ssub.s32 %s27, %s34
      %p419 = scmp.eq.s32.totalorder %s418, 0
      %s421 = sadd.s32 %s420, 1
      %s422 = scalar_select %p419, %s420, %s421
      %p425 = pneg %p419
      %p426 = scmp.eq.s32.totalorder %s27, 1
      %p427 = por %p425, %p426
      %p428 = scmp.ne.s32.totalorder %s420, %s423
      %p429 = scmp.eq.s32.totalorder %s27, 0
      %p430 = por %p428, %p429
      %p431 = scmp.ne.s32.totalorder %s420, %s423
      %p432 = scmp.eq.s32.totalorder %s32, 1
      %p433 = por %p431, %p432
      %p434 = scmp.ne.s32.totalorder %s423, %s424
      %p435 = scmp.eq.s32.totalorder %s32, 0
      %p436 = por %p434, %p435
      %p437 = scmp.ne.s32.totalorder %s423, %s424
      %p438 = scmp.eq.s32.totalorder %s33, 1
      %p439 = por %p437, %p438
      %p441 = scmp.ne.s32.totalorder %s424, %s440
      %p442 = scmp.eq.s32.totalorder %s33, 0
      %p443 = por %p441, %p442
      %p444 = scmp.le.s32.totalorder 1, %s27
      %p445 = scmp.lt.s32.totalorder %s27, 3
      %p446 = pnand %p444, %p445
      %p447 = pneg %p446
      // Predicated region
      $region9: #{tpu_custom_call.1} parent=5 // pred_check
        _
      $region10: #{tpu_custom_call.1} parent=5 // pred_check_branch
        %449 = sbr.rel (%p446) target = $region12
      $region11: #{tpu_custom_call.1} parent=5 // pred_region
        %s450 = ssub.s32 %s27, 1
        // Predicated region
        $region13: #{tpu_custom_call.1} parent=11 // pred_check
          %p451 = pneg %p74
        $region14: #{tpu_custom_call.1} parent=11 // pred_check_branch
          %453 = sbr.rel (%p451) target = $region16
        $region15: #{tpu_custom_call.1} parent=11 // pred_region
          _
        $region16: #{tpu_custom_call.1} parent=11 // pred_fallthru
          _
        // Predicated region
        $region17: #{tpu_custom_call.1} parent=11 // pred_check
          %p454 = pneg %p95
        $region18: #{tpu_custom_call.1} parent=11 // pred_check_branch
          %456 = sbr.rel (%p454) target = $region20
        $region19: #{tpu_custom_call.1} parent=11 // pred_region
          _
        $region20: #{tpu_custom_call.1} parent=11 // pred_fallthru
          _
        // Predicated region
        $region21: #{tpu_custom_call.1} parent=11 // pred_check
          %p457 = pneg %p116
        $region22: #{tpu_custom_call.1} parent=11 // pred_check_branch
          %459 = sbr.rel (%p457) target = $region24
        $region23: #{tpu_custom_call.1} parent=11 // pred_region
          _
        $region24: #{tpu_custom_call.1} parent=11 // pred_fallthru
          _
        // Predicated region
        $region25: #{tpu_custom_call.1} parent=11 // pred_check
          %p460 = pneg %p137
        $region26: #{tpu_custom_call.1} parent=11 // pred_check_branch
          %462 = sbr.rel (%p460) target = $region28
        $region27: #{tpu_custom_call.1} parent=11 // pred_region
          _
        $region28: #{tpu_custom_call.1} parent=11 // pred_fallthru
          _
        // Predicated region
        $region29: #{tpu_custom_call.1} parent=11 // pred_check
          %p463 = pneg %p158
        $region30: #{tpu_custom_call.1} parent=11 // pred_check_branch
          %465 = sbr.rel (%p463) target = $region32
        $region31: #{tpu_custom_call.1} parent=11 // pred_region
          _
        $region32: #{tpu_custom_call.1} parent=11 // pred_fallthru
          _
        // Predicated region
        $region33: #{tpu_custom_call.1} parent=11 // pred_check
          %p466 = pneg %p179
        $region34: #{tpu_custom_call.1} parent=11 // pred_check_branch
          %468 = sbr.rel (%p466) target = $region36
        $region35: #{tpu_custom_call.1} parent=11 // pred_region
          _
        $region36: #{tpu_custom_call.1} parent=11 // pred_fallthru
          _
        // Predicated region
        $region37: #{tpu_custom_call.1} parent=11 // pred_check
          %p469 = pneg %p200
        $region38: #{tpu_custom_call.1} parent=11 // pred_check_branch
          %471 = sbr.rel (%p469) target = $region40
        $region39: #{tpu_custom_call.1} parent=11 // pred_region
          _
        $region40: #{tpu_custom_call.1} parent=11 // pred_fallthru
          _
        // Predicated region
        $region41: #{tpu_custom_call.1} parent=11 // pred_check
          %p472 = pneg %p221
        $region42: #{tpu_custom_call.1} parent=11 // pred_check_branch
          %474 = sbr.rel (%p472) target = $region44
        $region43: #{tpu_custom_call.1} parent=11 // pred_region
          _
        $region44: #{tpu_custom_call.1} parent=11 // pred_fallthru
          _
        // Predicated region
        $region45: #{tpu_custom_call.1} parent=11 // pred_check
          %p475 = pneg %p242
        $region46: #{tpu_custom_call.1} parent=11 // pred_check_branch
          %477 = sbr.rel (%p475) target = $region48
        $region47: #{tpu_custom_call.1} parent=11 // pred_region
          _
        $region48: #{tpu_custom_call.1} parent=11 // pred_fallthru
          _
        // Predicated region
        $region49: #{tpu_custom_call.1} parent=11 // pred_check
          %p478 = pneg %p263
        $region50: #{tpu_custom_call.1} parent=11 // pred_check_branch
          %480 = sbr.rel (%p478) target = $region52
        $region51: #{tpu_custom_call.1} parent=11 // pred_region
          _
        $region52: #{tpu_custom_call.1} parent=11 // pred_fallthru
          _
        // Predicated region
        $region53: #{tpu_custom_call.1} parent=11 // pred_check
          %p481 = pneg %p284
        $region54: #{tpu_custom_call.1} parent=11 // pred_check_branch
          %483 = sbr.rel (%p481) target = $region56
        $region55: #{tpu_custom_call.1} parent=11 // pred_region
          _
        $region56: #{tpu_custom_call.1} parent=11 // pred_fallthru
          _
        // Predicated region
        $region57: #{tpu_custom_call.1} parent=11 // pred_check
          %p484 = pneg %p305
        $region58: #{tpu_custom_call.1} parent=11 // pred_check_branch
          %486 = sbr.rel (%p484) target = $region60
        $region59: #{tpu_custom_call.1} parent=11 // pred_region
          _
        $region60: #{tpu_custom_call.1} parent=11 // pred_fallthru
          _
        // Predicated region
        $region61: #{tpu_custom_call.1} parent=11 // pred_check
          %p487 = pneg %p326
        $region62: #{tpu_custom_call.1} parent=11 // pred_check_branch
          %489 = sbr.rel (%p487) target = $region64
        $region63: #{tpu_custom_call.1} parent=11 // pred_region
          _
        $region64: #{tpu_custom_call.1} parent=11 // pred_fallthru
          _
        // Predicated region
        $region65: #{tpu_custom_call.1} parent=11 // pred_check
          %p490 = pneg %p347
        $region66: #{tpu_custom_call.1} parent=11 // pred_check_branch
          %492 = sbr.rel (%p490) target = $region68
        $region67: #{tpu_custom_call.1} parent=11 // pred_region
          _
        $region68: #{tpu_custom_call.1} parent=11 // pred_fallthru
          _
        // Predicated region
        $region69: #{tpu_custom_call.1} parent=11 // pred_check
          %p493 = pneg %p368
        $region70: #{tpu_custom_call.1} parent=11 // pred_check_branch
          %495 = sbr.rel (%p493) target = $region72
        $region71: #{tpu_custom_call.1} parent=11 // pred_region
          _
        $region72: #{tpu_custom_call.1} parent=11 // pred_fallthru
          _
        // Predicated region
        $region73: #{tpu_custom_call.1} parent=11 // pred_check
          %p496 = pneg %p389
        $region74: #{tpu_custom_call.1} parent=11 // pred_check_branch
          %498 = sbr.rel (%p496) target = $region76
        $region75: #{tpu_custom_call.1} parent=11 // pred_region
          _
        $region76: #{tpu_custom_call.1} parent=11 // pred_fallthru
          _
        // Predicated region
        $region77: #{tpu_custom_call.1} parent=11 // pred_check
          %p499 = pneg %p410
        $region78: #{tpu_custom_call.1} parent=11 // pred_check_branch
          %501 = sbr.rel (%p499) target = $region80
        $region79: #{tpu_custom_call.1} parent=11 // pred_region
          _
        $region80: #{tpu_custom_call.1} parent=11 // pred_fallthru
          _
      $region12: #{tpu_custom_call.1} parent=5 // pred_fallthru
        _
      %p502 = scmp.lt.s32.totalorder %s27, 2
      // Predicated region
      $region81: #{tpu_custom_call.1} parent=5 // pred_check
        %p503 = pneg %p502
      $region82: #{tpu_custom_call.1} parent=5 // pred_check_branch
        %505 = sbr.rel (%p503) target = $region84
      $region83: #{tpu_custom_call.1} parent=5 // pred_region
        // Predicated region
        $region85: #{tpu_custom_call.1} parent=83 // pred_check
          %p506 = pneg %p47
        $region86: #{tpu_custom_call.1} parent=83 // pred_check_branch
          %508 = sbr.rel (%p506) target = $region88
        $region87: #{tpu_custom_call.1} parent=83 // pred_region
          %p509 = scmp.lt.s32.totalorder %s27, 1
          %s510 = scalar_select %p509, %s27, 1
          %s511 = smul.addr %s510, 2
          %s512 = smul.addr %s511, 4
          %s513 = scalar_lea.vmem %s0, %s512
        $region88: #{tpu_custom_call.1} parent=83 // pred_fallthru
          _
      $region84: #{tpu_custom_call.1} parent=5 // pred_fallthru
        _
      %p514 = scmp.le.s32.totalorder 1, %s27
      %p515 = scmp.lt.s32.totalorder %s27, 3
      %p516 = pnand %p514, %p515
      %p517 = pneg %p516
      // Predicated region
      $region89: #{tpu_custom_call.1} parent=5 // pred_check
        _
      $region90: #{tpu_custom_call.1} parent=5 // pred_check_branch
        %519 = sbr.rel (%p516) target = $region92
      $region91: #{tpu_custom_call.1} parent=5 // pred_region
        %s520 = ssub.s32 %s27, 1
        %p521 = scmp.lt.s32.totalorder %s32, 1
        %s522 = scalar_select %p521, %s32, 1
        %s523 = smul.addr %s522, 2
        %s524 = smul.addr %s523, 4
        %s525 = scalar_lea.vmem %s0, %s524
        %p526 = pneg %p53
        %p527 = pneg %p50
        %p528 = pneg %p74
        %p529 = pneg %p71
        %p530 = pneg %p95
        %p531 = pneg %p92
        %p532 = pneg %p116
        %p533 = pneg %p113
        %p534 = pneg %p137
        %p535 = pneg %p134
        %p536 = pneg %p158
        %p537 = pneg %p155
        %p538 = pneg %p179
        %p539 = pneg %p176
        %p540 = pneg %p200
        %p541 = pneg %p197
        %p542 = pneg %p221
        %p543 = pneg %p218
        %p544 = pneg %p242
        %p545 = pneg %p239
        %p546 = pneg %p263
        %p547 = pneg %p260
        %p548 = pneg %p284
        %p549 = pneg %p281
        %p550 = pneg %p305
        %p551 = pneg %p302
        %p552 = pneg %p326
        %p553 = pneg %p323
        %p554 = pneg %p347
        %p555 = pneg %p344
        %p556 = pneg %p368
        %p557 = pneg %p365
        %p558 = pneg %p389
        %p559 = pneg %p386
        %p560 = pneg %p410
        %p561 = pneg %p407
        %p562 = pneg %p436
        %p563 = pneg %p433
        %s564 = sand.u32 %s423, 1
        %s565 = scalar_lea.sflag [#allocation3], %s564
        %s566 = sand.u32 %s423, 1
        %s567 = smul.addr %s566, 32
        %s568 = scalar_lea.vmem [#allocation2], %s567
        %p569 = scmp.lt.s32.totalorder %s32, 1
        %s570 = scalar_select %p569, %s32, 1
        %s571 = smul.addr %s570, 2
        %s572 = smul.addr %s571, 4
        %s573 = scalar_lea.vmem %s0, %s572
        %v574 = vld [vmem:[%s573] sm:$0xff]
        %v575 = vld [vmem:[%s1] sm:$0xff]
        %v576 = vld [vmem:[%s1 + $0x8] sm:$0xff]
        %v578 = vcombine.high %v574, %v574
        %vm579 = vcmask 31744
        %v581 = vsel %vm579, %v575, 0
        %v584 = vsel %vm579, %v576, 0
        %vm586 = vcmask 1043456
        %v587 = vsel %vm586, %v574, 0
        %v589 = vsel %vm586, %v578, 0
        %591 = vmatprep.subr.mxu0 %v589
        %592 = vmatpush1.msra.mxu0 %v587
        %593 = vmatprep.subr.mxu0 0.0
        %594 = vmatpush1.msra.mxu0 0.0
        %595 = vmatprep.subr.mxu0 0.0
        %596 = vmatpush1.msra.mxu0 0.0
        %597 = vmatprep.subr.mxu0 0.0
        %598 = vmatpush1.msra.mxu0 0.0
        %599 = vmatprep.subr.mxu0 0.0
        %600 = vmatpush1.msra.mxu0 0.0
        %601 = vmatprep.subr.mxu0 0.0
        %602 = vmatpush1.msra.mxu0 0.0
        %603 = vmatprep.subr.mxu0 0.0
        %604 = vmatpush1.msra.mxu0 0.0
        %605 = vmatprep.subr.mxu0 0.0
        %606 = vmatpush1.msra.mxu0 0.0
        %607 = vmatprep.subr.mxu0 0.0
        %608 = vmatpush1.msra.mxu0 0.0
        %609 = vmatprep.subr.mxu0 0.0
        %610 = vmatpush1.msra.mxu0 0.0
        %611 = vmatprep.subr.mxu0 0.0
        %612 = vmatpush1.msra.mxu0 0.0
        %613 = vmatprep.subr.mxu0 0.0
        %614 = vmatpush1.msra.mxu0 0.0
        %615 = vmatprep.subr.mxu0 0.0
        %616 = vmatpush1.msra.mxu0 0.0
        %617 = vmatprep.subr.mxu0 0.0
        %618 = vmatpush1.msra.mxu0 0.0
        %619 = vmatprep.subr.mxu0 0.0
        %620 = vmatpush1.msra.mxu0 0.0
        %621 = vmatprep.subr.mxu0 0.0
        %622 = vmatpush1.msra.mxu0 0.0
        %623 = vmatprep.subr.mxu0 0.0
        %624 = vmatpush1.msra.mxu0 0.0
        %625 = vmatprep.subr.mxu0 0.0
        %626 = vmatpush1.msra.mxu0 0.0
        %627 = vmatprep.subr.mxu0 0.0
        %628 = vmatpush1.msra.mxu0 0.0
        %629 = vmatprep.subr.mxu0 0.0
        %630 = vmatpush1.msra.mxu0 0.0
        %631 = vmatprep.subr.mxu0 0.0
        %632 = vmatpush1.msra.mxu0 0.0
        %633 = vmatprep.subr.mxu0 0.0
        %634 = vmatpush1.msra.mxu0 0.0
        %635 = vmatprep.subr.mxu0 0.0
        %636 = vmatpush1.msra.mxu0 0.0
        %637 = vmatprep.subr.mxu0 0.0
        %638 = vmatpush1.msra.mxu0 0.0
        %639 = vmatprep.subr.mxu0 0.0
        %640 = vmatpush1.msra.mxu0 0.0
        %641 = vmatprep.subr.mxu0 0.0
        %642 = vmatpush1.msra.mxu0 0.0
        %643 = vmatprep.subr.mxu0 0.0
        %644 = vmatpush1.msra.mxu0 0.0
        %645 = vmatprep.subr.mxu0 0.0
        %646 = vmatpush1.msra.mxu0 0.0
        %647 = vmatprep.subr.mxu0 0.0
        %648 = vmatpush1.msra.mxu0 0.0
        %649 = vmatprep.subr.mxu0 0.0
        %650 = vmatpush1.msra.mxu0 0.0
        %651 = vmatprep.subr.mxu0 0.0
        %652 = vmatpush1.msra.mxu0 0.0
        %653 = vmatprep.subr.mxu0 0.0
        %654 = vmatpush1.msra.mxu0 0.0
        %655 = vmatprep.mubr.f32.mxu0 0.0
        %656 = vmatmul.mubr.f32.gmra.mrb[0].mxu0 %v581
        %v657 = vpop.f32.mrb[0].mxu0
        %v658 = vadd.f32 0.0, %v657
        %v659 = vpop.f32.mrb[0].mxu0
        %v660 = vadd.f32 0.0, %v659
        %661 = vmatprep.mubr.f32.mxu0 0.0
        %662 = vmatmul.mubr.f32.gmra.mrb[0].mxu0 %v584
        %v663 = vpop.f32.mrb[0].mxu0
        %v664 = vadd.f32 0.0, %v663
        %v665 = vpop.f32.mrb[0].mxu0
        %v666 = vadd.f32 0.0, %v665
        %667 = vdwg.mxu0
        %v668 = vld [vmem:[%s2] sm:$0xff]
        %v669 = vld [vmem:[%s2 + $0x8] sm:$0xff]
        %671 = vset.pattern.permute.xlu0 0
        %672 = vperm.xlu0 %671, %v668
        %v673 = vpop.permute.xlu0 %672
        %676 = vset.pattern.permute.xlu0 0
        %677 = vperm.xlu0 %676, %v669
        %v678 = vpop.permute.xlu0 %677
        %v680 = vmul.f32 %v658, %v673
        %v681 = vmul.f32 %v660, %v673
        %v682 = vmul.f32 %v664, %v678
        %v683 = vmul.f32 %v666, %v678
        %v684 = vld [vmem:[%s3] sm:$0xff]
        %v685 = vld [vmem:[%s3 + $0x8] sm:$0xff]
        %687 = vset.pattern.permute.xlu0 0
        %688 = vperm.xlu0 %687, %v684
        %v689 = vpop.permute.xlu0 %688
        %692 = vset.pattern.permute.xlu0 0
        %693 = vperm.xlu0 %692, %v685
        %v694 = vpop.permute.xlu0 %693
        %v696 = vadd.f32 %v680, %v689
        %v697 = vadd.f32 %v681, %v689
        %v698 = vadd.f32 %v682, %v694
        %v699 = vadd.f32 %v683, %v694
        %v700 = vmax.f32 %v696, 0.0
        %v701 = vmax.f32 %v697, 0.0
        %v702 = vmax.f32 %v698, 0.0
        %v703 = vmax.f32 %v699, 0.0
        %v704 = vld [vmem:[%s4] sm:$0xff]
        %v705 = vld [vmem:[%s4 + $0x8] sm:$0xff]
        %v706 = vld [vmem:[%s4 + $0x10] sm:$0xff]
        %v707 = vld [vmem:[%s4 + $0x18] sm:$0xff]
        %v708 = vld [vmem:[%s4 + $0x20] sm:$0xff]
        %v709 = vld [vmem:[%s4 + $0x28] sm:$0xff]
        %v710 = vld [vmem:[%s4 + $0x30] sm:$0xff]
        %v711 = vld [vmem:[%s4 + $0x38] sm:$0xff]
        %v712 = vld [vmem:[%s4 + $0x40] sm:$0xff]
        %v713 = vld [vmem:[%s4 + $0x48] sm:$0xff]
        %v714 = vld [vmem:[%s4 + $0x50] sm:$0xff]
        %v715 = vld [vmem:[%s4 + $0x58] sm:$0xff]
        %v716 = vld [vmem:[%s4 + $0x60] sm:$0xff]
        %v717 = vld [vmem:[%s4 + $0x68] sm:$0xff]
        %v718 = vld [vmem:[%s4 + $0x70] sm:$0xff]
        %v719 = vld [vmem:[%s4 + $0x78] sm:$0xff]
        %v720 = vld [vmem:[%s4 + $0x80] sm:$0xff]
        %v721 = vld [vmem:[%s4 + $0x88] sm:$0xff]
        %v722 = vld [vmem:[%s4 + $0x90] sm:$0xff]
        %v723 = vld [vmem:[%s4 + $0x98] sm:$0xff]
        %v724 = vld [vmem:[%s4 + $0xa0] sm:$0xff]
        %v725 = vld [vmem:[%s4 + $0xa8] sm:$0xff]
        %v726 = vld [vmem:[%s4 + $0xb0] sm:$0xff]
        %v727 = vld [vmem:[%s4 + $0xb8] sm:$0xff]
        %v728 = vld [vmem:[%s4 + $0xc0] sm:$0xff]
        %v729 = vld [vmem:[%s4 + $0xc8] sm:$0xff]
        %v730 = vld [vmem:[%s4 + $0xd0] sm:$0xff]
        %v731 = vld [vmem:[%s4 + $0xd8] sm:$0xff]
        %v732 = vld [vmem:[%s4 + $0xe0] sm:$0xff]
        %v733 = vld [vmem:[%s4 + $0xe8] sm:$0xff]
        %v734 = vld [vmem:[%s4 + $0xf0] sm:$0xff]
        %v735 = vld [vmem:[%s4 + $0xf8] sm:$0xff]
        %736 = vmatprep.subr.mxu0 0.0
        %737 = vmatpush1.msra.mxu0 %v704
        %738 = vmatprep.subr.mxu0 0.0
        %739 = vmatpush1.msra.mxu0 %v705
        %740 = vmatprep.subr.mxu0 0.0
        %741 = vmatpush1.msra.mxu0 %v706
        %742 = vmatprep.subr.mxu0 0.0
        %743 = vmatpush1.msra.mxu0 %v707
        %744 = vmatprep.subr.mxu0 0.0
        %745 = vmatpush1.msra.mxu0 %v708
        %746 = vmatprep.subr.mxu0 0.0
        %747 = vmatpush1.msra.mxu0 %v709
        %748 = vmatprep.subr.mxu0 0.0
        %749 = vmatpush1.msra.mxu0 %v710
        %750 = vmatprep.subr.mxu0 0.0
        %751 = vmatpush1.msra.mxu0 %v711
        %752 = vmatprep.subr.mxu0 0.0
        %753 = vmatpush1.msra.mxu0 %v712
        %754 = vmatprep.subr.mxu0 0.0
        %755 = vmatpush1.msra.mxu0 %v713
        %756 = vmatprep.subr.mxu0 0.0
        %757 = vmatpush1.msra.mxu0 %v714
        %758 = vmatprep.subr.mxu0 0.0
        %759 = vmatpush1.msra.mxu0 %v715
        %760 = vmatprep.subr.mxu0 0.0
        %761 = vmatpush1.msra.mxu0 %v716
        %762 = vmatprep.subr.mxu0 0.0
        %763 = vmatpush1.msra.mxu0 %v717
        %764 = vmatprep.subr.mxu0 0.0
        %765 = vmatpush1.msra.mxu0 %v718
        %766 = vmatprep.subr.mxu0 0.0
        %767 = vmatpush1.msra.mxu0 %v719
        %768 = vmatprep.subr.mxu0 0.0
        %769 = vmatpush1.msra.mxu0 %v720
        %770 = vmatprep.subr.mxu0 0.0
        %771 = vmatpush1.msra.mxu0 %v721
        %772 = vmatprep.subr.mxu0 0.0
        %773 = vmatpush1.msra.mxu0 %v722
        %774 = vmatprep.subr.mxu0 0.0
        %775 = vmatpush1.msra.mxu0 %v723
        %776 = vmatprep.subr.mxu0 0.0
        %777 = vmatpush1.msra.mxu0 %v724
        %778 = vmatprep.subr.mxu0 0.0
        %779 = vmatpush1.msra.mxu0 %v725
        %780 = vmatprep.subr.mxu0 0.0
        %781 = vmatpush1.msra.mxu0 %v726
        %782 = vmatprep.subr.mxu0 0.0
        %783 = vmatpush1.msra.mxu0 %v727
        %784 = vmatprep.subr.mxu0 0.0
        %785 = vmatpush1.msra.mxu0 %v728
        %786 = vmatprep.subr.mxu0 0.0
        %787 = vmatpush1.msra.mxu0 %v729
        %788 = vmatprep.subr.mxu0 0.0
        %789 = vmatpush1.msra.mxu0 %v730
        %790 = vmatprep.subr.mxu0 0.0
        %791 = vmatpush1.msra.mxu0 %v731
        %792 = vmatprep.subr.mxu0 0.0
        %793 = vmatpush1.msra.mxu0 %v732
        %794 = vmatprep.subr.mxu0 0.0
        %795 = vmatpush1.msra.mxu0 %v733
        %796 = vmatprep.subr.mxu0 0.0
        %797 = vmatpush1.msra.mxu0 %v734
        %798 = vmatprep.subr.mxu0 0.0
        %799 = vmatpush1.msra.mxu0 %v735
        %800 = vmatprep.mubr.f32.mxu0 %v701
        %801 = vmatmul.mubr.f32.gmra.mrb[0].mxu0 %v700
        %v802 = vpop.f32.mrb[0].mxu0
        %v803 = vadd.f32 0.0, %v802
        %v804 = vpop.f32.mrb[0].mxu0
        %805 = vmatprep.mubr.f32.mxu0 %v703
        %806 = vmatmul.mubr.f32.gmra.mrb[0].mxu0 %v702
        %v807 = vpop.f32.mrb[0].mxu0
        %v808 = vadd.f32 0.0, %v807
        %v809 = vpop.f32.mrb[0].mxu0
        %810 = vdwg.mxu0
        %813 = vrot.lane.b32.xlu0 %v803, 127
        %v814 = vpop.permute.xlu0 %813
        %815 = vrot.lane.b32.xlu0 %v808, 127
        %v816 = vpop.permute.xlu0 %815
        %819 = vrot.lane.b32.xlu0 %v803, 126
        %v820 = vpop.permute.xlu0 %819
        %821 = vrot.lane.b32.xlu0 %v808, 126
        %v822 = vpop.permute.xlu0 %821
        %825 = vrot.lane.b32.xlu0 %v803, 125
        %v826 = vpop.permute.xlu0 %825
        %827 = vrot.lane.b32.xlu0 %v808, 125
        %v828 = vpop.permute.xlu0 %827
        %831 = vrot.lane.b32.xlu0 %v803, 124
        %v832 = vpop.permute.xlu0 %831
        %833 = vrot.lane.b32.xlu0 %v808, 124
        %v834 = vpop.permute.xlu0 %833
        %837 = vrot.lane.b32.xlu0 %v803, 123
        %v838 = vpop.permute.xlu0 %837
        %839 = vrot.lane.b32.xlu0 %v808, 123
        %v840 = vpop.permute.xlu0 %839
        %843 = vrot.lane.b32.xlu0 %v803, 122
        %v844 = vpop.permute.xlu0 %843
        %845 = vrot.lane.b32.xlu0 %v808, 122
        %v846 = vpop.permute.xlu0 %845
        %849 = vrot.lane.b32.xlu0 %v803, 121
        %v850 = vpop.permute.xlu0 %849
        %851 = vrot.lane.b32.xlu0 %v808, 121
        %v852 = vpop.permute.xlu0 %851
        %855 = vrot.lane.b32.xlu0 %v803, 120
        %v856 = vpop.permute.xlu0 %855
        %857 = vrot.lane.b32.xlu0 %v808, 120
        %v858 = vpop.permute.xlu0 %857
        %861 = vrot.lane.b32.xlu0 %v803, 119
        %v862 = vpop.permute.xlu0 %861
        %863 = vrot.lane.b32.xlu0 %v808, 119
        %v864 = vpop.permute.xlu0 %863
        %867 = vrot.lane.b32.xlu0 %v803, 118
        %v868 = vpop.permute.xlu0 %867
        %869 = vrot.lane.b32.xlu0 %v808, 118
        %v870 = vpop.permute.xlu0 %869
        %873 = vrot.lane.b32.xlu0 %v803, 117
        %v874 = vpop.permute.xlu0 %873
        %875 = vrot.lane.b32.xlu0 %v808, 117
        %v876 = vpop.permute.xlu0 %875
        %879 = vrot.lane.b32.xlu0 %v803, 116
        %v880 = vpop.permute.xlu0 %879
        %881 = vrot.lane.b32.xlu0 %v808, 116
        %v882 = vpop.permute.xlu0 %881
        %885 = vrot.lane.b32.xlu0 %v803, 115
        %v886 = vpop.permute.xlu0 %885
        %887 = vrot.lane.b32.xlu0 %v808, 115
        %v888 = vpop.permute.xlu0 %887
        %891 = vrot.lane.b32.xlu0 %v803, 114
        %v892 = vpop.permute.xlu0 %891
        %893 = vrot.lane.b32.xlu0 %v808, 114
        %v894 = vpop.permute.xlu0 %893
        %897 = vrot.lane.b32.xlu0 %v803, 113
        %v898 = vpop.permute.xlu0 %897
        %899 = vrot.lane.b32.xlu0 %v808, 113
        %v900 = vpop.permute.xlu0 %899
        %903 = vrot.lane.b32.xlu0 %v803, 112
        %v904 = vpop.permute.xlu0 %903
        %905 = vrot.lane.b32.xlu0 %v808, 112
        %v906 = vpop.permute.xlu0 %905
        %907 = vrot.lane.b32.xlu0 %v814, 112
        %v908 = vpop.permute.xlu0 %907
        %909 = vrot.lane.b32.xlu0 %v816, 112
        %v910 = vpop.permute.xlu0 %909
        %911 = vrot.lane.b32.xlu0 %v820, 112
        %v912 = vpop.permute.xlu0 %911
        %913 = vrot.lane.b32.xlu0 %v822, 112
        %v914 = vpop.permute.xlu0 %913
        %915 = vrot.lane.b32.xlu0 %v826, 112
        %v916 = vpop.permute.xlu0 %915
        %917 = vrot.lane.b32.xlu0 %v828, 112
        %v918 = vpop.permute.xlu0 %917
        %919 = vrot.lane.b32.xlu0 %v832, 112
        %v920 = vpop.permute.xlu0 %919
        %921 = vrot.lane.b32.xlu0 %v834, 112
        %v922 = vpop.permute.xlu0 %921
        %v933 = vld [vmem:[%s5] sm:$0x7]
        %v935 = vlaneseq
        %v936 = vshrl.u32 %v935, 7
        %v937 = vsub.s32 0, %v936
        %v938 = vrot.slane %v933, %v937
        %v939 = vlaneseq
        %v940 = vshrl.u32 %v939, 7
        %v941 = vsub.s32 1, %v940
        %v942 = vrot.slane %v933, %v941
        %v943 = vlaneseq
        %v944 = vshrl.u32 %v943, 7
        %v945 = vsub.s32 2, %v944
        %v946 = vrot.slane %v933, %v945
        %vm949 = vcmask 654336
        %v950 = vsel %vm949, %v946, 0
        %952 = vmatprep.subr.mxu0 0.0
        %953 = vmatpush1.msra.mxu0 %v803
        %954 = vmatprep.subr.mxu0 0.0
        %955 = vmatpush1.msra.mxu0 %v808
        %956 = vmatprep.subr.mxu0 0.0
        %957 = vmatpush1.msra.mxu0 %v814
        %958 = vmatprep.subr.mxu0 0.0
        %959 = vmatpush1.msra.mxu0 %v816
        %960 = vmatprep.subr.mxu0 0.0
        %961 = vmatpush1.msra.mxu0 %v820
        %962 = vmatprep.subr.mxu0 0.0
        %963 = vmatpush1.msra.mxu0 %v822
        %964 = vmatprep.subr.mxu0 0.0
        %965 = vmatpush1.msra.mxu0 %v826
        %966 = vmatprep.subr.mxu0 0.0
        %967 = vmatpush1.msra.mxu0 %v828
        %968 = vmatprep.subr.mxu0 0.0
        %969 = vmatpush1.msra.mxu0 %v832
        %970 = vmatprep.subr.mxu0 0.0
        %971 = vmatpush1.msra.mxu0 %v834
        %972 = vmatprep.subr.mxu0 0.0
        %973 = vmatpush1.msra.mxu0 %v838
        %974 = vmatprep.subr.mxu0 0.0
        %975 = vmatpush1.msra.mxu0 %v840
        %976 = vmatprep.subr.mxu0 0.0
        %977 = vmatpush1.msra.mxu0 %v844
        %978 = vmatprep.subr.mxu0 0.0
        %979 = vmatpush1.msra.mxu0 %v846
        %980 = vmatprep.subr.mxu0 0.0
        %981 = vmatpush1.msra.mxu0 %v850
        %982 = vmatprep.subr.mxu0 0.0
        %983 = vmatpush1.msra.mxu0 %v852
        %984 = vmatprep.subr.mxu0 0.0
        %985 = vmatpush1.msra.mxu0 %v856
        %986 = vmatprep.subr.mxu0 0.0
        %987 = vmatpush1.msra.mxu0 %v858
        %988 = vmatprep.subr.mxu0 0.0
        %989 = vmatpush1.msra.mxu0 %v862
        %990 = vmatprep.subr.mxu0 0.0
        %991 = vmatpush1.msra.mxu0 %v864
        %992 = vmatprep.subr.mxu0 0.0
        %993 = vmatpush1.msra.mxu0 %v868
        %994 = vmatprep.subr.mxu0 0.0
        %995 = vmatpush1.msra.mxu0 %v870
        %996 = vmatprep.subr.mxu0 0.0
        %997 = vmatpush1.msra.mxu0 %v874
        %998 = vmatprep.subr.mxu0 0.0
        %999 = vmatpush1.msra.mxu0 %v876
        %1000 = vmatprep.subr.mxu0 0.0
        %1001 = vmatpush1.msra.mxu0 %v880
        %1002 = vmatprep.subr.mxu0 0.0
        %1003 = vmatpush1.msra.mxu0 %v882
        %1004 = vmatprep.subr.mxu0 0.0
        %1005 = vmatpush1.msra.mxu0 %v886
        %1006 = vmatprep.subr.mxu0 0.0
        %1007 = vmatpush1.msra.mxu0 %v888
        %1008 = vmatprep.subr.mxu0 0.0
        %1009 = vmatpush1.msra.mxu0 %v892
        %1010 = vmatprep.subr.mxu0 0.0
        %1011 = vmatpush1.msra.mxu0 %v894
        %1012 = vmatprep.subr.mxu0 0.0
        %1013 = vmatpush1.msra.mxu0 %v898
        %1014 = vmatprep.subr.mxu0 0.0
        %1015 = vmatpush1.msra.mxu0 %v900
        %1016 = vmatprep.mubr.f32.mxu0 %v942
        %1017 = vmatmul.mubr.f32.gmra.mrb[0].mxu0 %v938
        %v1018 = vpop.f32.mrb[0].mxu0
        %v1019 = vadd.f32 0.0, %v1018
        %v1020 = vpop.f32.mrb[0].mxu0
        %1021 = vdwg.mxu0
        %1022 = vmatprep.subr.mxu0 0.0
        %1023 = vmatpush1.msra.mxu0 %v904
        %1024 = vmatprep.subr.mxu0 0.0
        %1025 = vmatpush1.msra.mxu0 %v906
        %1026 = vmatprep.subr.mxu0 0.0
        %1027 = vmatpush1.msra.mxu0 %v908
        %1028 = vmatprep.subr.mxu0 0.0
        %1029 = vmatpush1.msra.mxu0 %v910
        %1030 = vmatprep.subr.mxu0 0.0
        %1031 = vmatpush1.msra.mxu0 %v912
        %1032 = vmatprep.subr.mxu0 0.0
        %1033 = vmatpush1.msra.mxu0 %v914
        %1034 = vmatprep.subr.mxu0 0.0
        %1035 = vmatpush1.msra.mxu0 %v916
        %1036 = vmatprep.subr.mxu0 0.0
        %1037 = vmatpush1.msra.mxu0 %v918
        %1038 = vmatprep.subr.mxu0 0.0
        %1039 = vmatpush1.msra.mxu0 %v920
        %1040 = vmatprep.subr.mxu0 0.0
        %1041 = vmatpush1.msra.mxu0 %v922
        %1042 = vmatprep.subr.mxu0 0.0
        %1043 = vmatpush1.msra.mxu0 0.0
        %1044 = vmatprep.subr.mxu0 0.0
        %1045 = vmatpush1.msra.mxu0 0.0
        %1046 = vmatprep.subr.mxu0 0.0
        %1047 = vmatpush1.msra.mxu0 0.0
        %1048 = vmatprep.subr.mxu0 0.0
        %1049 = vmatpush1.msra.mxu0 0.0
        %1050 = vmatprep.subr.mxu0 0.0
        %1051 = vmatpush1.msra.mxu0 0.0
        %1052 = vmatprep.subr.mxu0 0.0
        %1053 = vmatpush1.msra.mxu0 0.0
        %1054 = vmatprep.subr.mxu0 0.0
        %1055 = vmatpush1.msra.mxu0 0.0
        %1056 = vmatprep.subr.mxu0 0.0
        %1057 = vmatpush1.msra.mxu0 0.0
        %1058 = vmatprep.subr.mxu0 0.0
        %1059 = vmatpush1.msra.mxu0 0.0
        %1060 = vmatprep.subr.mxu0 0.0
        %1061 = vmatpush1.msra.mxu0 0.0
        %1062 = vmatprep.subr.mxu0 0.0
        %1063 = vmatpush1.msra.mxu0 0.0
        %1064 = vmatprep.subr.mxu0 0.0
        %1065 = vmatpush1.msra.mxu0 0.0
        %1066 = vmatprep.subr.mxu0 0.0
        %1067 = vmatpush1.msra.mxu0 0.0
        %1068 = vmatprep.subr.mxu0 0.0
        %1069 = vmatpush1.msra.mxu0 0.0
        %1070 = vmatprep.subr.mxu0 0.0
        %1071 = vmatpush1.msra.mxu0 0.0
        %1072 = vmatprep.subr.mxu0 0.0
        %1073 = vmatpush1.msra.mxu0 0.0
        %1074 = vmatprep.subr.mxu0 0.0
        %1075 = vmatpush1.msra.mxu0 0.0
        %1076 = vmatprep.subr.mxu0 0.0
        %1077 = vmatpush1.msra.mxu0 0.0
        %1078 = vmatprep.subr.mxu0 0.0
        %1079 = vmatpush1.msra.mxu0 0.0
        %1080 = vmatprep.subr.mxu0 0.0
        %1081 = vmatpush1.msra.mxu0 0.0
        %1082 = vmatprep.subr.mxu0 0.0
        %1083 = vmatpush1.msra.mxu0 0.0
        %1084 = vmatprep.subr.mxu0 0.0
        %1085 = vmatpush1.msra.mxu0 0.0
        %1086 = vmatprep.mubr.f32.mxu0 0.0
        %1087 = vmatmul.mubr.f32.gmra.mrb[0].mxu0 %v950
        %v1088 = vpop.f32.mrb[0].mxu0
        %v1089 = vadd.f32 %v1019, %v1088
        %v1090 = vpop.f32.mrb[0].mxu0
        %1091 = vdwg.mxu0
        %v1092 = vmax.f32 %v1089, 0.0
        %v1093 = vld [vmem:[%s6] sm:$0xff]
        %v1094 = vld [vmem:[%s6 + $0x8] sm:$0xff]
        %vm1095 = vcmask 7168
        %v1097 = vsel %vm1095, %v1093, 0
        %v1100 = vsel %vm1095, %v1094, 0
        %vm1102 = vcmask 1040384
        %v1104 = vsel %vm1102, %v1092, 0
        %1106 = vmatprep.subr.mxu0 0.0
        %1107 = vmatpush1.msra.mxu0 %v1104
        %1108 = vmatprep.subr.mxu0 0.0
        %1109 = vmatpush1.msra.mxu0 0.0
        %1110 = vmatprep.subr.mxu0 0.0
        %1111 = vmatpush1.msra.mxu0 0.0
        %1112 = vmatprep.subr.mxu0 0.0
        %1113 = vmatpush1.msra.mxu0 0.0
        %1114 = vmatprep.subr.mxu0 0.0
        %1115 = vmatpush1.msra.mxu0 0.0
        %1116 = vmatprep.subr.mxu0 0.0
        %1117 = vmatpush1.msra.mxu0 0.0
        %1118 = vmatprep.subr.mxu0 0.0
        %1119 = vmatpush1.msra.mxu0 0.0
        %1120 = vmatprep.subr.mxu0 0.0
        %1121 = vmatpush1.msra.mxu0 0.0
        %1122 = vmatprep.subr.mxu0 0.0
        %1123 = vmatpush1.msra.mxu0 0.0
        %1124 = vmatprep.subr.mxu0 0.0
        %1125 = vmatpush1.msra.mxu0 0.0
        %1126 = vmatprep.subr.mxu0 0.0
        %1127 = vmatpush1.msra.mxu0 0.0
        %1128 = vmatprep.subr.mxu0 0.0
        %1129 = vmatpush1.msra.mxu0 0.0
        %1130 = vmatprep.subr.mxu0 0.0
        %1131 = vmatpush1.msra.mxu0 0.0
        %1132 = vmatprep.subr.mxu0 0.0
        %1133 = vmatpush1.msra.mxu0 0.0
        %1134 = vmatprep.subr.mxu0 0.0
        %1135 = vmatpush1.msra.mxu0 0.0
        %1136 = vmatprep.subr.mxu0 0.0
        %1137 = vmatpush1.msra.mxu0 0.0
        %1138 = vmatprep.subr.mxu0 0.0
        %1139 = vmatpush1.msra.mxu0 0.0
        %1140 = vmatprep.subr.mxu0 0.0
        %1141 = vmatpush1.msra.mxu0 0.0
        %1142 = vmatprep.subr.mxu0 0.0
        %1143 = vmatpush1.msra.mxu0 0.0
        %1144 = vmatprep.subr.mxu0 0.0
        %1145 = vmatpush1.msra.mxu0 0.0
        %1146 = vmatprep.subr.mxu0 0.0
        %1147 = vmatpush1.msra.mxu0 0.0
        %1148 = vmatprep.subr.mxu0 0.0
        %1149 = vmatpush1.msra.mxu0 0.0
        %1150 = vmatprep.subr.mxu0 0.0
        %1151 = vmatpush1.msra.mxu0 0.0
        %1152 = vmatprep.subr.mxu0 0.0
        %1153 = vmatpush1.msra.mxu0 0.0
        %1154 = vmatprep.subr.mxu0 0.0
        %1155 = vmatpush1.msra.mxu0 0.0
        %1156 = vmatprep.subr.mxu0 0.0
        %1157 = vmatpush1.msra.mxu0 0.0
        %1158 = vmatprep.subr.mxu0 0.0
        %1159 = vmatpush1.msra.mxu0 0.0
        %1160 = vmatprep.subr.mxu0 0.0
        %1161 = vmatpush1.msra.mxu0 0.0
        %1162 = vmatprep.subr.mxu0 0.0
        %1163 = vmatpush1.msra.mxu0 0.0
        %1164 = vmatprep.subr.mxu0 0.0
        %1165 = vmatpush1.msra.mxu0 0.0
        %1166 = vmatprep.subr.mxu0 0.0
        %1167 = vmatpush1.msra.mxu0 0.0
        %1168 = vmatprep.subr.mxu0 0.0
        %1169 = vmatpush1.msra.mxu0 0.0
        %1170 = vmatprep.mubr.f32.mxu0 0.0
        %1171 = vmatmul.mubr.f32.gmra.mrb[0].mxu0 %v1097
        %v1172 = vpop.f32.mrb[0].mxu0
        %v1173 = vadd.f32 0.0, %v1172
        %v1174 = vpop.f32.mrb[0].mxu0
        %1175 = vmatprep.mubr.f32.mxu0 0.0
        %1176 = vmatmul.mubr.f32.gmra.mrb[0].mxu0 %v1100
        %v1177 = vpop.f32.mrb[0].mxu0
        %v1178 = vadd.f32 0.0, %v1177
        %v1179 = vpop.f32.mrb[0].mxu0
        %1180 = vdwg.mxu0
        %v1181 = vxor.u32 %v1173, 2147483648
        %v1182 = vxor.u32 %v1178, 2147483648
        %v1183 = vmul.f32 %v1181, 1.442695
        %v1184 = vpow.pop %v1183
        %v1185 = vmul.f32 %v1182, 1.442695
        %v1186 = vpow.pop %v1185
        %v1187 = vadd.f32 %v1184, 1.0
        %v1188 = vadd.f32 %v1186, 1.0
        %v1189 = vrcp.pop %v1187
        %v1190 = vmul.f32 1.0, %v1189
        %v1191 = vrcp.pop %v1188
        %v1192 = vmul.f32 1.0, %v1191
        %v1193 = vld [vmem:[%s8] sm:$0xf]
        %1195 = vset.pattern.permute.xlu0 0
        %1196 = vperm.xlu0 %1195, %v1193
        %v1197 = vpop.permute.xlu0 %1196
        %v1199 = vunpack.c.l.s4 839922192
        %v1200 = vunpack.c.0.s8 %v1199
        %v1201 = vlaneseq
        %v1202 = vshrl.u32 %v1201, 7
        %v1203 = vsub.s32 %v1200, %v1202
        %v1204 = vrot.slane %v1197, %v1203
        %v1206 = vmul.f32 %v574, %v1204
        %v1207 = vld [vmem:[%s9] sm:$0xf]
        %1209 = vset.pattern.permute.xlu0 0
        %1210 = vperm.xlu0 %1209, %v1207
        %v1211 = vpop.permute.xlu0 %1210
        %v1213 = vunpack.c.l.s4 839922192
        %v1214 = vunpack.c.0.s8 %v1213
        %v1215 = vlaneseq
        %v1216 = vshrl.u32 %v1215, 7
        %v1217 = vsub.s32 %v1214, %v1216
        %v1218 = vrot.slane %v1211, %v1217
        %v1220 = vadd.f32 %v1206, %v1218
        %v1221 = vmax.f32 %v1220, 0.0
        %v1222 = vld [vmem:[%s17] sm:$0xff]
        %v1223 = vld [vmem:[%s17 + $0x8] sm:$0xff]
        %v1225 = vcombine.high %v1221, %v1221
        %v1227 = vsel %vm579, %v1222, 0
        %v1230 = vsel %vm579, %v1223, 0
        %v1232 = vsel %vm586, %v1221, 0
        %v1234 = vsel %vm586, %v1225, 0
        %1236 = vmatprep.subr.mxu0 %v1234
        %1237 = vmatpush1.msra.mxu0 %v1232
        %1238 = vmatprep.subr.mxu0 0.0
        %1239 = vmatpush1.msra.mxu0 0.0
        %1240 = vmatprep.subr.mxu0 0.0
        %1241 = vmatpush1.msra.mxu0 0.0
        %1242 = vmatprep.subr.mxu0 0.0
        %1243 = vmatpush1.msra.mxu0 0.0
        %1244 = vmatprep.subr.mxu0 0.0
        %1245 = vmatpush1.msra.mxu0 0.0
        %1246 = vmatprep.subr.mxu0 0.0
        %1247 = vmatpush1.msra.mxu0 0.0
        %1248 = vmatprep.subr.mxu0 0.0
        %1249 = vmatpush1.msra.mxu0 0.0
        %1250 = vmatprep.subr.mxu0 0.0
        %1251 = vmatpush1.msra.mxu0 0.0
        %1252 = vmatprep.subr.mxu0 0.0
        %1253 = vmatpush1.msra.mxu0 0.0
        %1254 = vmatprep.subr.mxu0 0.0
        %1255 = vmatpush1.msra.mxu0 0.0
        %1256 = vmatprep.subr.mxu0 0.0
        %1257 = vmatpush1.msra.mxu0 0.0
        %1258 = vmatprep.subr.mxu0 0.0
        %1259 = vmatpush1.msra.mxu0 0.0
        %1260 = vmatprep.subr.mxu0 0.0
        %1261 = vmatpush1.msra.mxu0 0.0
        %1262 = vmatprep.subr.mxu0 0.0
        %1263 = vmatpush1.msra.mxu0 0.0
        %1264 = vmatprep.subr.mxu0 0.0
        %1265 = vmatpush1.msra.mxu0 0.0
        %1266 = vmatprep.subr.mxu0 0.0
        %1267 = vmatpush1.msra.mxu0 0.0
        %1268 = vmatprep.subr.mxu0 0.0
        %1269 = vmatpush1.msra.mxu0 0.0
        %1270 = vmatprep.subr.mxu0 0.0
        %1271 = vmatpush1.msra.mxu0 0.0
        %1272 = vmatprep.subr.mxu0 0.0
        %1273 = vmatpush1.msra.mxu0 0.0
        %1274 = vmatprep.subr.mxu0 0.0
        %1275 = vmatpush1.msra.mxu0 0.0
        %1276 = vmatprep.subr.mxu0 0.0
        %1277 = vmatpush1.msra.mxu0 0.0
        %1278 = vmatprep.subr.mxu0 0.0
        %1279 = vmatpush1.msra.mxu0 0.0
        %1280 = vmatprep.subr.mxu0 0.0
        %1281 = vmatpush1.msra.mxu0 0.0
        %1282 = vmatprep.subr.mxu0 0.0
        %1283 = vmatpush1.msra.mxu0 0.0
        %1284 = vmatprep.subr.mxu0 0.0
        %1285 = vmatpush1.msra.mxu0 0.0
        %1286 = vmatprep.subr.mxu0 0.0
        %1287 = vmatpush1.msra.mxu0 0.0
        %1288 = vmatprep.subr.mxu0 0.0
        %1289 = vmatpush1.msra.mxu0 0.0
        %1290 = vmatprep.subr.mxu0 0.0
        %1291 = vmatpush1.msra.mxu0 0.0
        %1292 = vmatprep.subr.mxu0 0.0
        %1293 = vmatpush1.msra.mxu0 0.0
        %1294 = vmatprep.subr.mxu0 0.0
        %1295 = vmatpush1.msra.mxu0 0.0
        %1296 = vmatprep.subr.mxu0 0.0
        %1297 = vmatpush1.msra.mxu0 0.0
        %1298 = vmatprep.subr.mxu0 0.0
        %1299 = vmatpush1.msra.mxu0 0.0
        %1300 = vmatprep.mubr.f32.mxu0 0.0
        %1301 = vmatmul.mubr.f32.gmra.mrb[0].mxu0 %v1227
        %v1302 = vpop.f32.mrb[0].mxu0
        %v1303 = vadd.f32 0.0, %v1302
        %v1304 = vpop.f32.mrb[0].mxu0
        %v1305 = vadd.f32 0.0, %v1304
        %1306 = vmatprep.mubr.f32.mxu0 0.0
        %1307 = vmatmul.mubr.f32.gmra.mrb[0].mxu0 %v1230
        %v1308 = vpop.f32.mrb[0].mxu0
        %v1309 = vadd.f32 0.0, %v1308
        %v1310 = vpop.f32.mrb[0].mxu0
        %v1311 = vadd.f32 0.0, %v1310
        %1312 = vdwg.mxu0
        %v1313 = vld [vmem:[%s10] sm:$0xf]
        %v1315 = vsel %vm579, %v1313, 0
        %1317 = vmatprep.subr.mxu0 %v1234
        %1318 = vmatpush1.msra.mxu0 %v1232
        %1319 = vmatprep.subr.mxu0 0.0
        %1320 = vmatpush1.msra.mxu0 0.0
        %1321 = vmatprep.subr.mxu0 0.0
        %1322 = vmatpush1.msra.mxu0 0.0
        %1323 = vmatprep.subr.mxu0 0.0
        %1324 = vmatpush1.msra.mxu0 0.0
        %1325 = vmatprep.subr.mxu0 0.0
        %1326 = vmatpush1.msra.mxu0 0.0
        %1327 = vmatprep.subr.mxu0 0.0
        %1328 = vmatpush1.msra.mxu0 0.0
        %1329 = vmatprep.subr.mxu0 0.0
        %1330 = vmatpush1.msra.mxu0 0.0
        %1331 = vmatprep.subr.mxu0 0.0
        %1332 = vmatpush1.msra.mxu0 0.0
        %1333 = vmatprep.subr.mxu0 0.0
        %1334 = vmatpush1.msra.mxu0 0.0
        %1335 = vmatprep.subr.mxu0 0.0
        %1336 = vmatpush1.msra.mxu0 0.0
        %1337 = vmatprep.subr.mxu0 0.0
        %1338 = vmatpush1.msra.mxu0 0.0
        %1339 = vmatprep.subr.mxu0 0.0
        %1340 = vmatpush1.msra.mxu0 0.0
        %1341 = vmatprep.subr.mxu0 0.0
        %1342 = vmatpush1.msra.mxu0 0.0
        %1343 = vmatprep.subr.mxu0 0.0
        %1344 = vmatpush1.msra.mxu0 0.0
        %1345 = vmatprep.subr.mxu0 0.0
        %1346 = vmatpush1.msra.mxu0 0.0
        %1347 = vmatprep.subr.mxu0 0.0
        %1348 = vmatpush1.msra.mxu0 0.0
        %1349 = vmatprep.subr.mxu0 0.0
        %1350 = vmatpush1.msra.mxu0 0.0
        %1351 = vmatprep.subr.mxu0 0.0
        %1352 = vmatpush1.msra.mxu0 0.0
        %1353 = vmatprep.subr.mxu0 0.0
        %1354 = vmatpush1.msra.mxu0 0.0
        %1355 = vmatprep.subr.mxu0 0.0
        %1356 = vmatpush1.msra.mxu0 0.0
        %1357 = vmatprep.subr.mxu0 0.0
        %1358 = vmatpush1.msra.mxu0 0.0
        %1359 = vmatprep.subr.mxu0 0.0
        %1360 = vmatpush1.msra.mxu0 0.0
        %1361 = vmatprep.subr.mxu0 0.0
        %1362 = vmatpush1.msra.mxu0 0.0
        %1363 = vmatprep.subr.mxu0 0.0
        %1364 = vmatpush1.msra.mxu0 0.0
        %1365 = vmatprep.subr.mxu0 0.0
        %1366 = vmatpush1.msra.mxu0 0.0
        %1367 = vmatprep.subr.mxu0 0.0
        %1368 = vmatpush1.msra.mxu0 0.0
        %1369 = vmatprep.subr.mxu0 0.0
        %1370 = vmatpush1.msra.mxu0 0.0
        %1371 = vmatprep.subr.mxu0 0.0
        %1372 = vmatpush1.msra.mxu0 0.0
        %1373 = vmatprep.subr.mxu0 0.0
        %1374 = vmatpush1.msra.mxu0 0.0
        %1375 = vmatprep.subr.mxu0 0.0
        %1376 = vmatpush1.msra.mxu0 0.0
        %1377 = vmatprep.subr.mxu0 0.0
        %1378 = vmatpush1.msra.mxu0 0.0
        %1379 = vmatprep.subr.mxu0 0.0
        %1380 = vmatpush1.msra.mxu0 0.0
        %1381 = vmatprep.mubr.f32.mxu0 0.0
        %1382 = vmatmul.mubr.f32.gmra.mrb[0].mxu0 %v1315
        %v1383 = vpop.f32.mrb[0].mxu0
        %v1384 = vadd.f32 0.0, %v1383
        %v1385 = vpop.f32.mrb[0].mxu0
        %v1386 = vadd.f32 0.0, %v1385
        %1387 = vdwg.mxu0
        %v1388 = vld [vmem:[%s11] sm:$0xf]
        %1390 = vset.pattern.permute.xlu0 0
        %1391 = vperm.xlu0 %1390, %v1388
        %v1392 = vpop.permute.xlu0 %1391
        %v1394 = vmul.f32 %v1384, %v1392
        %v1395 = vmul.f32 %v1386, %v1392
        %v1396 = vld [vmem:[%s12] sm:$0xf]
        %1398 = vset.pattern.permute.xlu0 0
        %1399 = vperm.xlu0 %1398, %v1396
        %v1400 = vpop.permute.xlu0 %1399
        %v1402 = vadd.f32 %v1394, %v1400
        %v1403 = vadd.f32 %v1395, %v1400
        %v1404 = vmax.f32 %v1402, 0.0
        %v1405 = vmax.f32 %v1403, 0.0
        %1406 = vrot.lane.b32.xlu0 %v1404, 17
        %v1407 = vpop.permute.xlu0 %1406
        %1408 = vrot.lane.b32.xlu0 %v1405, 17
        %v1409 = vpop.permute.xlu0 %1408
        %v1410 = vlaneseq
        %v1411 = vand.u32 %v1410, 127
        %vm1412 = vcmp.lt.s32.totalorder %v1411, 17
        %v1413 = vsel %vm1412, %v1407, %v1409
        %v1414 = vsel %vm1412, %v1409, %v1407
        %v1415 = vld [vmem:[%s7] ss:$8 sm:$0x3]
        %v1417 = vlaneseq
        %v1418 = vshrl.u32 %v1417, 7
        %v1419 = vsub.s32 0, %v1418
        %v1420 = vrot.slane %v1415, %v1419
        %v1421 = vlaneseq
        %v1422 = vshrl.u32 %v1421, 7
        %v1423 = vsub.s32 1, %v1422
        %v1424 = vrot.slane %v1415, %v1423
        %v1427 = vmul.f32 %v1414, %v1420
        %v1428 = vmul.f32 %v1413, %v1424
        %1429 = vrot.lane.b32.xlu0 %v1404, 16
        %v1430 = vpop.permute.xlu0 %1429
        %1431 = vrot.lane.b32.xlu0 %v1405, 16
        %v1432 = vpop.permute.xlu0 %1431
        %vm1433 = vcmp.lt.s32.totalorder %v1411, 16
        %v1434 = vsel %vm1433, %v1430, %v1432
        %v1435 = vsel %vm1433, %v1432, %v1430
        %s1436 = scalar_lea.vmem %s7, 1
        %v1437 = vld [vmem:[%s1436] ss:$8 sm:$0x3]
        %v1439 = vlaneseq
        %v1440 = vshrl.u32 %v1439, 7
        %v1441 = vsub.s32 0, %v1440
        %v1442 = vrot.slane %v1437, %v1441
        %v1443 = vlaneseq
        %v1444 = vshrl.u32 %v1443, 7
        %v1445 = vsub.s32 1, %v1444
        %v1446 = vrot.slane %v1437, %v1445
        %v1449 = vmul.f32 %v1435, %v1442
        %v1450 = vmul.f32 %v1434, %v1446
        %1451 = vrot.lane.b32.xlu0 %v1404, 15
        %v1452 = vpop.permute.xlu0 %1451
        %1453 = vrot.lane.b32.xlu0 %v1405, 15
        %v1454 = vpop.permute.xlu0 %1453
        %vm1455 = vcmp.lt.s32.totalorder %v1411, 15
        %v1456 = vsel %vm1455, %v1452, %v1454
        %v1457 = vsel %vm1455, %v1454, %v1452
        %s1458 = scalar_lea.vmem %s7, 2
        %v1459 = vld [vmem:[%s1458] ss:$8 sm:$0x3]
        %v1461 = vlaneseq
        %v1462 = vshrl.u32 %v1461, 7
        %v1463 = vsub.s32 0, %v1462
        %v1464 = vrot.slane %v1459, %v1463
        %v1465 = vlaneseq
        %v1466 = vshrl.u32 %v1465, 7
        %v1467 = vsub.s32 1, %v1466
        %v1468 = vrot.slane %v1459, %v1467
        %v1471 = vmul.f32 %v1457, %v1464
        %v1472 = vmul.f32 %v1456, %v1468
        %1473 = vrot.lane.b32.xlu0 %v1404, 1
        %v1474 = vpop.permute.xlu0 %1473
        %1475 = vrot.lane.b32.xlu0 %v1405, 1
        %v1476 = vpop.permute.xlu0 %1475
        %vm1477 = vcmp.lt.s32.totalorder %v1411, 1
        %v1478 = vsel %vm1477, %v1474, %v1476
        %v1479 = vsel %vm1477, %v1476, %v1474
        %s1480 = scalar_lea.vmem %s7, 3
        %v1481 = vld [vmem:[%s1480] ss:$8 sm:$0x3]
        %v1483 = vlaneseq
        %v1484 = vshrl.u32 %v1483, 7
        %v1485 = vsub.s32 0, %v1484
        %v1486 = vrot.slane %v1481, %v1485
        %v1487 = vlaneseq
        %v1488 = vshrl.u32 %v1487, 7
        %v1489 = vsub.s32 1, %v1488
        %v1490 = vrot.slane %v1481, %v1489
        %v1493 = vmul.f32 %v1479, %v1486
        %v1494 = vmul.f32 %v1478, %v1490
        %s1495 = scalar_lea.vmem %s7, 4
        %v1496 = vld [vmem:[%s1495] ss:$8 sm:$0x3]
        %v1498 = vlaneseq
        %v1499 = vshrl.u32 %v1498, 7
        %v1500 = vsub.s32 0, %v1499
        %v1501 = vrot.slane %v1496, %v1500
        %v1502 = vlaneseq
        %v1503 = vshrl.u32 %v1502, 7
        %v1504 = vsub.s32 1, %v1503
        %v1505 = vrot.slane %v1496, %v1504
        %v1508 = vmul.f32 %v1404, %v1501
        %v1509 = vmul.f32 %v1405, %v1505
        %1510 = vrot.lane.b32.xlu0 %v1404, 127
        %v1511 = vpop.permute.xlu0 %1510
        %1512 = vrot.lane.b32.xlu0 %v1405, 127
        %v1513 = vpop.permute.xlu0 %1512
        %vm1514 = vcmp.lt.s32.totalorder %v1411, 127
        %v1515 = vsel %vm1514, %v1511, %v1513
        %v1516 = vsel %vm1514, %v1513, %v1511
        %s1517 = scalar_lea.vmem %s7, 5
        %v1518 = vld [vmem:[%s1517] ss:$8 sm:$0x3]
        %v1520 = vlaneseq
        %v1521 = vshrl.u32 %v1520, 7
        %v1522 = vsub.s32 0, %v1521
        %v1523 = vrot.slane %v1518, %v1522
        %v1524 = vlaneseq
        %v1525 = vshrl.u32 %v1524, 7
        %v1526 = vsub.s32 1, %v1525
        %v1527 = vrot.slane %v1518, %v1526
        %v1530 = vmul.f32 %v1515, %v1523
        %v1531 = vmul.f32 %v1516, %v1527
        %1532 = vrot.lane.b32.xlu0 %v1404, 113
        %v1533 = vpop.permute.xlu0 %1532
        %1534 = vrot.lane.b32.xlu0 %v1405, 113
        %v1535 = vpop.permute.xlu0 %1534
        %vm1536 = vcmp.lt.s32.totalorder %v1411, 113
        %v1537 = vsel %vm1536, %v1533, %v1535
        %v1538 = vsel %vm1536, %v1535, %v1533
        %s1539 = scalar_lea.vmem %s7, 6
        %v1540 = vld [vmem:[%s1539] ss:$8 sm:$0x3]
        %v1542 = vlaneseq
        %v1543 = vshrl.u32 %v1542, 7
        %v1544 = vsub.s32 0, %v1543
        %v1545 = vrot.slane %v1540, %v1544
        %v1546 = vlaneseq
        %v1547 = vshrl.u32 %v1546, 7
        %v1548 = vsub.s32 1, %v1547
        %v1549 = vrot.slane %v1540, %v1548
        %v1552 = vmul.f32 %v1537, %v1545
        %v1553 = vmul.f32 %v1538, %v1549
        %1554 = vrot.lane.b32.xlu0 %v1404, 112
        %v1555 = vpop.permute.xlu0 %1554
        %1556 = vrot.lane.b32.xlu0 %v1405, 112
        %v1557 = vpop.permute.xlu0 %1556
        %vm1558 = vcmp.lt.s32.totalorder %v1411, 112
        %v1559 = vsel %vm1558, %v1555, %v1557
        %v1560 = vsel %vm1558, %v1557, %v1555
        %s1561 = scalar_lea.vmem %s7, 7
        %v1562 = vld [vmem:[%s1561] ss:$8 sm:$0x3]
        %v1564 = vlaneseq
        %v1565 = vshrl.u32 %v1564, 7
        %v1566 = vsub.s32 0, %v1565
        %v1567 = vrot.slane %v1562, %v1566
        %v1568 = vlaneseq
        %v1569 = vshrl.u32 %v1568, 7
        %v1570 = vsub.s32 1, %v1569
        %v1571 = vrot.slane %v1562, %v1570
        %v1574 = vmul.f32 %v1559, %v1567
        %v1575 = vmul.f32 %v1560, %v1571
        %1576 = vrot.lane.b32.xlu0 %v1404, 111
        %v1577 = vpop.permute.xlu0 %1576
        %1578 = vrot.lane.b32.xlu0 %v1405, 111
        %v1579 = vpop.permute.xlu0 %1578
        %vm1580 = vcmp.lt.s32.totalorder %v1411, 111
        %v1581 = vsel %vm1580, %v1577, %v1579
        %v1582 = vsel %vm1580, %v1579, %v1577
        %s1583 = scalar_lea.vmem %s7, 16
        %v1584 = vld [vmem:[%s1583] ss:$8 sm:$0x3]
        %v1586 = vlaneseq
        %v1587 = vshrl.u32 %v1586, 7
        %v1588 = vsub.s32 0, %v1587
        %v1589 = vrot.slane %v1584, %v1588
        %v1590 = vlaneseq
        %v1591 = vshrl.u32 %v1590, 7
        %v1592 = vsub.s32 1, %v1591
        %v1593 = vrot.slane %v1584, %v1592
        %v1596 = vmul.f32 %v1581, %v1589
        %v1597 = vmul.f32 %v1582, %v1593
        %v1600 = vrot.slane %v1449, 4
        %v1601 = vrot.slane %v1450, 4
        %v1606 = vrot.slane %v1493, 4
        %v1607 = vrot.slane %v1494, 4
        %v1612 = vrot.slane %v1530, 4
        %v1613 = vrot.slane %v1531, 4
        %v1618 = vrot.slane %v1574, 4
        %v1619 = vrot.slane %v1575, 4
        %v1622 = vsel %vm586, %v1427, %v1600
        %v1623 = vsel %vm586, %v1428, %v1601
        %v1624 = vsel %vm586, %v1471, %v1606
        %v1625 = vsel %vm586, %v1472, %v1607
        %v1626 = vsel %vm586, %v1508, %v1612
        %v1627 = vsel %vm586, %v1509, %v1613
        %v1628 = vsel %vm586, %v1552, %v1618
        %v1629 = vsel %vm586, %v1553, %v1619
        %v1630 = vld [vmem:[%s13] sm:$0xf]
        %vm1631 = vcmask 293888
        %v1633 = vsel %vm1631, %v1630, 0
        %v1636 = vsel %vm586, %v1596, 0
        %v1639 = vsel %vm586, %v1597, 0
        %1641 = vmatprep.subr.mxu0 %v1623
        %1642 = vmatpush1.msra.mxu0 %v1622
        %1643 = vmatprep.subr.mxu0 %v1625
        %1644 = vmatpush1.msra.mxu0 %v1624
        %1645 = vmatprep.subr.mxu0 %v1627
        %1646 = vmatpush1.msra.mxu0 %v1626
        %1647 = vmatprep.subr.mxu0 %v1629
        %1648 = vmatpush1.msra.mxu0 %v1628
        %1649 = vmatprep.subr.mxu0 %v1639
        %1650 = vmatpush1.msra.mxu0 %v1636
        %1651 = vmatprep.subr.mxu0 0.0
        %1652 = vmatpush1.msra.mxu0 0.0
        %1653 = vmatprep.subr.mxu0 0.0
        %1654 = vmatpush1.msra.mxu0 0.0
        %1655 = vmatprep.subr.mxu0 0.0
        %1656 = vmatpush1.msra.mxu0 0.0
        %1657 = vmatprep.subr.mxu0 0.0
        %1658 = vmatpush1.msra.mxu0 0.0
        %1659 = vmatprep.subr.mxu0 0.0
        %1660 = vmatpush1.msra.mxu0 0.0
        %1661 = vmatprep.subr.mxu0 0.0
        %1662 = vmatpush1.msra.mxu0 0.0
        %1663 = vmatprep.subr.mxu0 0.0
        %1664 = vmatpush1.msra.mxu0 0.0
        %1665 = vmatprep.subr.mxu0 0.0
        %1666 = vmatpush1.msra.mxu0 0.0
        %1667 = vmatprep.subr.mxu0 0.0
        %1668 = vmatpush1.msra.mxu0 0.0
        %1669 = vmatprep.subr.mxu0 0.0
        %1670 = vmatpush1.msra.mxu0 0.0
        %1671 = vmatprep.subr.mxu0 0.0
        %1672 = vmatpush1.msra.mxu0 0.0
        %1673 = vmatprep.subr.mxu0 0.0
        %1674 = vmatpush1.msra.mxu0 0.0
        %1675 = vmatprep.subr.mxu0 0.0
        %1676 = vmatpush1.msra.mxu0 0.0
        %1677 = vmatprep.subr.mxu0 0.0
        %1678 = vmatpush1.msra.mxu0 0.0
        %1679 = vmatprep.subr.mxu0 0.0
        %1680 = vmatpush1.msra.mxu0 0.0
        %1681 = vmatprep.subr.mxu0 0.0
        %1682 = vmatpush1.msra.mxu0 0.0
        %1683 = vmatprep.subr.mxu0 0.0
        %1684 = vmatpush1.msra.mxu0 0.0
        %1685 = vmatprep.subr.mxu0 0.0
        %1686 = vmatpush1.msra.mxu0 0.0
        %1687 = vmatprep.subr.mxu0 0.0
        %1688 = vmatpush1.msra.mxu0 0.0
        %1689 = vmatprep.subr.mxu0 0.0
        %1690 = vmatpush1.msra.mxu0 0.0
        %1691 = vmatprep.subr.mxu0 0.0
        %1692 = vmatpush1.msra.mxu0 0.0
        %1693 = vmatprep.subr.mxu0 0.0
        %1694 = vmatpush1.msra.mxu0 0.0
        %1695 = vmatprep.subr.mxu0 0.0
        %1696 = vmatpush1.msra.mxu0 0.0
        %1697 = vmatprep.subr.mxu0 0.0
        %1698 = vmatpush1.msra.mxu0 0.0
        %1699 = vmatprep.subr.mxu0 0.0
        %1700 = vmatpush1.msra.mxu0 0.0
        %1701 = vmatprep.subr.mxu0 0.0
        %1702 = vmatpush1.msra.mxu0 0.0
        %1703 = vmatprep.subr.mxu0 0.0
        %1704 = vmatpush1.msra.mxu0 0.0
        %1705 = vmatprep.mubr.f32.mxu0 0.0
        %1706 = vmatmul.mubr.f32.gmra.mrb[0].mxu0 %v1633
        %v1707 = vpop.f32.mrb[0].mxu0
        %v1708 = vadd.f32 0.0, %v1707
        %v1709 = vpop.f32.mrb[0].mxu0
        %v1710 = vadd.f32 0.0, %v1709
        %1711 = vdwg.mxu0
        %v1712 = vld [vmem:[%s14] sm:$0xf]
        %1714 = vset.pattern.permute.xlu0 0
        %1715 = vperm.xlu0 %1714, %v1712
        %v1716 = vpop.permute.xlu0 %1715
        %v1718 = vmul.f32 %v1708, %v1716
        %v1719 = vmul.f32 %v1710, %v1716
        %v1720 = vld [vmem:[%s15] sm:$0xf]
        %1722 = vset.pattern.permute.xlu0 0
        %1723 = vperm.xlu0 %1722, %v1720
        %v1724 = vpop.permute.xlu0 %1723
        %v1726 = vadd.f32 %v1718, %v1724
        %v1727 = vadd.f32 %v1719, %v1724
        %v1728 = vmax.f32 %v1726, 0.0
        %v1729 = vmax.f32 %v1727, 0.0
        %v1730 = vld [vmem:[%s16] sm:$0xff]
        %v1731 = vld [vmem:[%s16 + $0x8] sm:$0xff]
        %v1733 = vsel %vm579, %v1730, 0
        %v1736 = vsel %vm579, %v1731, 0
        %v1739 = vsel %vm586, %v1728, 0
        %v1742 = vsel %vm586, %v1729, 0
        %1744 = vmatprep.subr.mxu0 %v1742
        %1745 = vmatpush1.msra.mxu0 %v1739
        %1746 = vmatprep.subr.mxu0 0.0
        %1747 = vmatpush1.msra.mxu0 0.0
        %1748 = vmatprep.subr.mxu0 0.0
        %1749 = vmatpush1.msra.mxu0 0.0
        %1750 = vmatprep.subr.mxu0 0.0
        %1751 = vmatpush1.msra.mxu0 0.0
        %1752 = vmatprep.subr.mxu0 0.0
        %1753 = vmatpush1.msra.mxu0 0.0
        %1754 = vmatprep.subr.mxu0 0.0
        %1755 = vmatpush1.msra.mxu0 0.0
        %1756 = vmatprep.subr.mxu0 0.0
        %1757 = vmatpush1.msra.mxu0 0.0
        %1758 = vmatprep.subr.mxu0 0.0
        %1759 = vmatpush1.msra.mxu0 0.0
        %1760 = vmatprep.subr.mxu0 0.0
        %1761 = vmatpush1.msra.mxu0 0.0
        %1762 = vmatprep.subr.mxu0 0.0
        %1763 = vmatpush1.msra.mxu0 0.0
        %1764 = vmatprep.subr.mxu0 0.0
        %1765 = vmatpush1.msra.mxu0 0.0
        %1766 = vmatprep.subr.mxu0 0.0
        %1767 = vmatpush1.msra.mxu0 0.0
        %1768 = vmatprep.subr.mxu0 0.0
        %1769 = vmatpush1.msra.mxu0 0.0
        %1770 = vmatprep.subr.mxu0 0.0
        %1771 = vmatpush1.msra.mxu0 0.0
        %1772 = vmatprep.subr.mxu0 0.0
        %1773 = vmatpush1.msra.mxu0 0.0
        %1774 = vmatprep.subr.mxu0 0.0
        %1775 = vmatpush1.msra.mxu0 0.0
        %1776 = vmatprep.subr.mxu0 0.0
        %1777 = vmatpush1.msra.mxu0 0.0
        %1778 = vmatprep.subr.mxu0 0.0
        %1779 = vmatpush1.msra.mxu0 0.0
        %1780 = vmatprep.subr.mxu0 0.0
        %1781 = vmatpush1.msra.mxu0 0.0
        %1782 = vmatprep.subr.mxu0 0.0
        %1783 = vmatpush1.msra.mxu0 0.0
        %1784 = vmatprep.subr.mxu0 0.0
        %1785 = vmatpush1.msra.mxu0 0.0
        %1786 = vmatprep.subr.mxu0 0.0
        %1787 = vmatpush1.msra.mxu0 0.0
        %1788 = vmatprep.subr.mxu0 0.0
        %1789 = vmatpush1.msra.mxu0 0.0
        %1790 = vmatprep.subr.mxu0 0.0
        %1791 = vmatpush1.msra.mxu0 0.0
        %1792 = vmatprep.subr.mxu0 0.0
        %1793 = vmatpush1.msra.mxu0 0.0
        %1794 = vmatprep.subr.mxu0 0.0
        %1795 = vmatpush1.msra.mxu0 0.0
        %1796 = vmatprep.subr.mxu0 0.0
        %1797 = vmatpush1.msra.mxu0 0.0
        %1798 = vmatprep.subr.mxu0 0.0
        %1799 = vmatpush1.msra.mxu0 0.0
        %1800 = vmatprep.subr.mxu0 0.0
        %1801 = vmatpush1.msra.mxu0 0.0
        %1802 = vmatprep.subr.mxu0 0.0
        %1803 = vmatpush1.msra.mxu0 0.0
        %1804 = vmatprep.subr.mxu0 0.0
        %1805 = vmatpush1.msra.mxu0 0.0
        %1806 = vmatprep.subr.mxu0 0.0
        %1807 = vmatpush1.msra.mxu0 0.0
        %1808 = vmatprep.mubr.f32.mxu0 0.0
        %1809 = vmatmul.mubr.f32.gmra.mrb[0].mxu0 %v1733
        %v1810 = vpop.f32.mrb[0].mxu0
        %v1811 = vadd.f32 0.0, %v1810
        %v1812 = vpop.f32.mrb[0].mxu0
        %v1813 = vadd.f32 0.0, %v1812
        %1814 = vmatprep.mubr.f32.mxu0 0.0
        %1815 = vmatmul.mubr.f32.gmra.mrb[0].mxu0 %v1736
        %v1816 = vpop.f32.mrb[0].mxu0
        %v1817 = vadd.f32 0.0, %v1816
        %v1818 = vpop.f32.mrb[0].mxu0
        %v1819 = vadd.f32 0.0, %v1818
        %1820 = vdwg.mxu0
        %1822 = vset.pattern.permute.xlu0 0
        %1823 = vperm.xlu0 %1822, %v1190
        %v1824 = vpop.permute.xlu0 %1823
        %1827 = vset.pattern.permute.xlu0 0
        %1828 = vperm.xlu0 %1827, %v1192
        %v1829 = vpop.permute.xlu0 %1828
        %v1831 = vmul.f32 %v1811, %v1824
        %v1832 = vmul.f32 %v1813, %v1824
        %v1833 = vmul.f32 %v1817, %v1829
        %v1834 = vmul.f32 %v1819, %v1829
        %v1835 = vadd.f32 %v1831, %v1303
        %v1836 = vadd.f32 %v1832, %v1305
        %v1837 = vadd.f32 %v1833, %v1309
        %v1838 = vadd.f32 %v1834, %v1311
        %1839 = vst [vmem:[%s568] sm:$0xff] %v1835
        %1840 = vst [vmem:[%s568 + $0x8] sm:$0xff] %v1836
        %1841 = vst [vmem:[%s568 + $0x10] sm:$0xff] %v1837
        %1842 = vst [vmem:[%s568 + $0x18] sm:$0xff] %v1838
        %s1843 = sand.u32 %s423, 1
        %s1844 = scalar_lea.sflag [#allocation3], %s1843
        %s1845 = sand.u32 %s423, 1
        %s1846 = smul.addr %s1845, 32
        %s1847 = scalar_lea.vmem [#allocation2], %s1846
        // Predicated region
        $region93: #{tpu_custom_call.1} parent=91 // pred_check
          %p1848 = pneg %p433
        $region94: #{tpu_custom_call.1} parent=91 // pred_check_branch
          %1850 = sbr.rel (%p1848) target = $region96
        $region95: #{tpu_custom_call.1} parent=91 // pred_region
          %s1852 = ssub.s32 512, 512
          %1853 = vsyncadd %s1844, %s1852
          %s1854 = smul.addr %s32, 4
          %s1855 = smul.addr %s1854, 128
          %s1856 = scalar_lea.hbm %s18, %s1855
          %s1857 = sshll.u32 %s1847, 4
          %s1858 = int_to_ptr.vmem [resolvable:$true] %s1857
          %1863 = dma.vmem_to_hbm [thread:$0]  %s1858, 512, %s1856, %s1844, 256, 256, 16
        $region96: #{tpu_custom_call.1} parent=91 // pred_fallthru
          _
      $region92: #{tpu_custom_call.1} parent=5 // pred_fallthru
        _
      %p1864 = scmp.le.s32.totalorder 2, %s27
      // Predicated region
      $region97: #{tpu_custom_call.1} parent=5 // pred_check
        %p1865 = pneg %p1864
      $region98: #{tpu_custom_call.1} parent=5 // pred_check_branch
        %1867 = sbr.rel (%p1865) target = $region100
      $region99: #{tpu_custom_call.1} parent=5 // pred_region
        %s1868 = ssub.s32 %s27, 2
        // Predicated region
        $region101: #{tpu_custom_call.1} parent=99 // pred_check
          %p1869 = pneg %p439
        $region102: #{tpu_custom_call.1} parent=99 // pred_check_branch
          %1871 = sbr.rel (%p1869) target = $region104
        $region103: #{tpu_custom_call.1} parent=99 // pred_region
          %s1872 = sand.u32 %s424, 1
          %s1873 = scalar_lea.sflag [#allocation3], %s1872
          %s1874 = sand.u32 %s424, 1
          %s1875 = smul.addr %s1874, 32
          %s1876 = scalar_lea.vmem [#allocation2], %s1875
          %1877 = dma.done %s1873, 512
        $region104: #{tpu_custom_call.1} parent=99 // pred_fallthru
          _
      $region100: #{tpu_custom_call.1} parent=5 // pred_fallthru
        _
    $region6: #{tpu_custom_call.1} parent=1 // loop_footer
      %s31 = sadd.s32 1, %s27
    $region7: #{tpu_custom_call.1} parent=1 // loop_footer_branch
      %26 = sbr.rel target = $region3
    $region8: #{tpu_custom_call.1} parent=1 // loop_exit
      _
    %1878 = vsyncpa [#allocation3], 1
    %s1879 = scalar_lea.sflag [#allocation3], 1
    %1880 = vsyncpa %s1879, 1

</llo_original>
